<compile_context>
chip_gen: v5e
topology: v5e:2x2
jax: 0.10.0
libtpu: 0.0.40
codegen_flags: <defaults>
</compile_context>

<pallas_src>
import jax
import jax.numpy as jnp
from jax.experimental import pallas as pl
from jax.experimental.pallas import tpu as pltpu

EPS = 1e-5  # nn.InstanceNorm2d default eps


def _round_up(x, m):
    return (x + m - 1) // m * m


def _make_kernel(kernel, wp, l_dense, l_out, cin, cout, ho, wo, stride, eps):
    kk = kernel * kernel
    inv_cnt = 1.0 / float(ho * wo)
    taps = [(ki, kj) for ki in range(kernel) for kj in range(kernel)]
    r_max = float(stride * (ho - 1))
    c_max = float(stride * (wo - 1))
    wp_f = float(wp)

    def conv_instnorm_kernel(x_ref, w_ref, p_ref, o_ref, xcol_ref):
        # x_ref    : (1, Cin, L_in)        bf16  flattened reflection-padded sample
        # w_ref    : (Cout, k*k*Cin)       bf16  taps folded into contraction dim
        # p_ref    : (Cout, 2)             f32   [:,0]=gamma  [:,1]=beta
        # o_ref    : (1, Cout, L_out)      f32   lane-dense output (written once)
        # xcol_ref : (k*k*Cin, L_out)      bf16  VMEM im2col scratch

        # ---- im2col: k*k lane-shifted copies written once into VMEM scratch ----
        xflat = x_ref[0]                                   # (Cin, L_in) bf16
        for t, (ki, kj) in enumerate(taps):
            off = ki * wp + kj                             # static lane shift
            xcol_ref[t * cin:(t + 1) * cin, :] = xflat[:, off:off + l_out]

        # ---- single MXU matmul, K = k*k*Cin, fp32 accumulation in registers ----
        y = jnp.dot(w_ref[...], xcol_ref[...],
                    preferred_element_type=jnp.float32)    # (Cout, L_out) f32

        # ---- in-kernel valid-anchor mask (no HBM mask stream) ------------------
        # f32 division of small exact integers is exact enough for row = idx//wp
        # (wp*ulp(hp) << 1 for any realistic image size), avoiding s32 div/rem.
        idx = jax.lax.broadcasted_iota(jnp.int32, (1, l_out), 1).astype(jnp.float32)
        row = jnp.floor(idx / wp_f)
        col = idx - row * wp_f
        valid = (idx < float(l_dense)) & (row <= r_max) & (col <= c_max)
        if stride > 1:
            s_f = float(stride)
            valid = valid & (row - jnp.floor(row / s_f) * s_f == 0.0)
            valid = valid & (col - jnp.floor(col / s_f) * s_f == 0.0)
        m = valid.astype(jnp.float32)                      # (1, L_out)

        # ---- one-pass masked InstanceNorm stats + fused affine epilogue --------
        ym = y * m
        s1 = jnp.sum(ym, axis=1, keepdims=True)            # (Cout, 1)
        s2 = jnp.sum(ym * y, axis=1, keepdims=True)        # sum(y^2 * mask)
        mean = s1 * inv_cnt
        var = jnp.maximum(s2 * inv_cnt - mean * mean, 0.0)

        gamma = p_ref[:, 0:1]                              # (Cout, 1)
        beta = p_ref[:, 1:2]
        scale = gamma * jax.lax.rsqrt(var + eps)
        shift = beta - mean * scale
        # Single unmasked, lane-dense store of the whole output block.
        o_ref[0] = y * scale + shift

    return conv_instnorm_kernel


def conv_layer_forward(x, conv_w, conv_b, gamma, beta, kernel, stride):
    """ConvLayer.forward: ReflectionPad2d(k//2) -> Conv2d(k, stride) -> InstanceNorm2d(affine).

    x:      (N, Cin, H, W)     conv_w: (Cout, Cin, k, k)     conv_b: (Cout,)
    gamma/beta: (Cout,)

    The Conv2d bias shifts each channel's conv output by a constant; affine
    InstanceNorm subtracts the per-channel mean, so the bias cancels exactly
    (in real arithmetic) and is intentionally not passed to the kernel.
    """
    del conv_b  # cancels under InstanceNorm; kept in the signature for API parity

    n, cin, h, w_in = x.shape
    cout = conv_w.shape[0]
    pad = kernel // 2
    kk = kernel * kernel

    # ReflectionPad2d(pad) — pure layout glue, done in plain JAX.
    xp = jnp.pad(x, ((0, 0), (0, 0), (pad, pad), (pad, pad)), mode="reflect")
    hp, wp = h + 2 * pad, w_in + 2 * pad
    ho = (hp - kernel) // stride + 1
    wo = (wp - kernel) // stride + 1

    l_dense = hp * wp                       # dense (stride-1) anchor grid
    l_out = _round_up(l_dense, 128)         # lane-aligned output length
    max_off = (kernel - 1) * (wp + 1)       # largest tap lane shift
    l_in = _round_up(l_out + max_off, 128)  # input length incl. halo + zero pad

    # Flattened, zero-tail-padded padded input in bf16 (halves DMA bytes).
    xf = xp.reshape(n, cin, l_dense).astype(jnp.bfloat16)
    xf = jnp.pad(xf, ((0, 0), (0, 0), (0, l_in - l_dense)))

    # Weights with taps folded into the contraction dim, rows ordered as the
    # im2col scratch: row (ki*k + kj)*Cin + c  <->  conv_w[o, c, ki, kj].
    w2 = (jnp.transpose(conv_w, (0, 2, 3, 1))
          .reshape(cout, kk * cin)
          .astype(jnp.bfloat16))

    # gamma/beta packed into one tiny f32 operand.
    params = jnp.stack([gamma, beta], axis=1).astype(jnp.float32)   # (Cout, 2)

    # Scoped-VMEM budget sized to the real block working set (with 2x margin).
    def _pad_up(a, m):
        return (a + m - 1) // m * m
    est = (2 * _pad_up(cin, 16) * l_in * 2                  # input, double-buffered bf16
           + 2 * _pad_up(cout, 16) * _pad_up(kk * cin, 128) * 2   # weights
           + 2 * _pad_up(cout, 8) * 128 * 4                 # gamma/beta (lane-padded)
           + 2 * _pad_up(cout, 8) * l_out * 4               # output, double-buffered f32
           + _pad_up(kk * cin, 16) * l_out * 2)             # im2col scratch bf16
    vmem_limit = int(min(max(2 * est, 16 * 1024 * 1024), 64 * 1024 * 1024))

    kern = _make_kernel(kernel, wp, l_dense, l_out, cin, cout, ho, wo, stride, EPS)

    def _call(single_buffer_consts):
        # Grid-invariant operands get a single VMEM buffer (frees headroom).
        const_pm = ({"pipeline_mode": pl.Buffered(1)}
                    if single_buffer_consts else {})
        grid_spec = pltpu.PrefetchScalarGridSpec(
            num_scalar_prefetch=0,
            grid=(n,),
            in_specs=[
                pl.BlockSpec((1, cin, l_in), lambda i: (i, 0, 0)),
                pl.BlockSpec((cout, kk * cin), lambda i: (0, 0), **const_pm),
                pl.BlockSpec((cout, 2), lambda i: (0, 0), **const_pm),
            ],
            out_specs=pl.BlockSpec((1, cout, l_out), lambda i: (i, 0, 0)),
            scratch_shapes=[pltpu.VMEM((kk * cin, l_out), jnp.bfloat16)],
        )
        return pl.pallas_call(
            kern,
            out_shape=jax.ShapeDtypeStruct((n, cout, l_out), jnp.float32),
            grid_spec=grid_spec,
            compiler_params=pltpu.CompilerParams(
                dimension_semantics=("parallel",),
                vmem_limit_bytes=vmem_limit),
        )(xf, w2, params)

    try:
        out = _call(True)
    except Exception:
        # Fallback if pl.Buffered(1) (single-buffered operands) is rejected
        # by this jax/libtpu build; identical semantics.
        out = _call(False)

    # Lane-dense result is already channel-major (NCHW order): drop the lane
    # padding and non-valid anchor columns/rows (subsample for stride > 1).
    out = out[:, :, :l_dense].reshape(n, cout, hp, wp)
    out = out[:, :, 0:stride * (ho - 1) + 1:stride,
                    0:stride * (wo - 1) + 1:stride]
    return out


def _reference(x, conv_w, conv_b, gamma, beta, kernel, stride):
    """Pure-JAX f32 reference of the PyTorch module (for the self-check)."""
    pad = kernel // 2
    xp = jnp.pad(x, ((0, 0), (0, 0), (pad, pad), (pad, pad)), mode="reflect")
    y = jax.lax.conv_general_dilated(
        xp, conv_w, window_strides=(stride, stride), padding="VALID",
        dimension_numbers=("NCHW", "OIHW", "NCHW"))
    y = y + conv_b[None, :, None, None]
    mean = jnp.mean(y, axis=(2, 3), keepdims=True)
    var = jnp.var(y, axis=(2, 3), keepdims=True)            # biased, like PyTorch
    yn = (y - mean) * jax.lax.rsqrt(var + EPS)
    return yn * gamma[None, :, None, None] + beta[None, :, None, None]


if __name__ == "__main__":
    # ConvLayer(in_channels=4, out_channels=8, kernel=3, stride=1)
    N, CIN, H, W = 2, 4, 16, 16
    COUT, K, STRIDE = 8, 3, 1

    key = jax.random.PRNGKey(0)
    kx, kw, kb, kg, kbt = jax.random.split(key, 5)

    x = jax.random.normal(kx, (N, CIN, H, W), dtype=jnp.float32)
    conv_w = 0.1 * jax.random.normal(kw, (COUT, CIN, K, K), dtype=jnp.float32)
    conv_b = 0.1 * jax.random.normal(kb, (COUT,), dtype=jnp.float32)
    gamma = 1.0 + 0.1 * jax.random.normal(kg, (COUT,), dtype=jnp.float32)
    beta = 0.1 * jax.random.normal(kbt, (COUT,), dtype=jnp.float32)

    out = conv_layer_forward(x, conv_w, conv_b, gamma, beta, K, STRIDE)
    out = jax.block_until_ready(out)
    assert out.shape == (N, COUT, H, W), out.shape

    # Numerical self-check against the pure-JAX f32 reference (bf16 MXU inputs
    # => loose tolerance).
    ref = _reference(x, conv_w, conv_b, gamma, beta, K, STRIDE)
    err = float(jnp.max(jnp.abs(out - ref)))
    assert err < 1e-1, f"max abs err vs reference: {err}"

    print("KERNEL_OK")
</pallas_src>

<mosaic_0001>
module attributes {stable_mosaic.version = 11 : i64} {
  func.func @conv_instnorm_kernel(%arg0: i32, %arg1: memref<1x4x512xbf16, #tpu.memory_space<vmem>>, %arg2: memref<8x36xbf16, #tpu.memory_space<vmem>>, %arg3: memref<8x2xf32, #tpu.memory_space<vmem>>, %arg4: memref<1x8x384xf32, #tpu.memory_space<vmem>>, %arg5: memref<36x384xbf16, #tpu.memory_space<vmem>>) attributes {dimension_semantics = [#tpu.dimension_semantics<parallel>], iteration_bounds = array<i64: 2>, scalar_prefetch = 0 : i64, scratch_operands = 1 : i64, tpu.core_type = #tpu.core_type<tc>, window_params = [{transform_indices = @transform_0, window_bounds = array<i64: 1, 4, 512>}, {pipeline_mode = #tpu.pipeline_mode<synchronous>, transform_indices = @transform_1, window_bounds = array<i64: 8, 36>}, {pipeline_mode = #tpu.pipeline_mode<synchronous>, transform_indices = @transform_2, window_bounds = array<i64: 8, 2>}, {transform_indices = @transform_3, window_bounds = array<i64: 1, 8, 384>}]} {
    %c0 = arith.constant 0 : index
    %c0_0 = arith.constant 0 : index
    %c0_1 = arith.constant 0 : index
    %0 = vector.load %arg1[%c0, %c0_0, %c0_1] : memref<1x4x512xbf16, #tpu.memory_space<vmem>>, vector<1x4x512xbf16>
    %1 = vector.shape_cast %0 : vector<1x4x512xbf16> to vector<4x512xbf16>
    %2 = vector.extract_strided_slice %1 {offsets = [0, 0], sizes = [4, 384], strides = [1, 1]} : vector<4x512xbf16> to vector<4x384xbf16>
    %c0_2 = arith.constant 0 : index
    %c0_3 = arith.constant 0 : index
    %3 = vector.load %arg5[%c0_2, %c0_3] : memref<36x384xbf16, #tpu.memory_space<vmem>>, vector<4x384xbf16>
    tpu.vector_store %arg5[%c0_2, %c0_3], %2 {strides = array<i32>} : memref<36x384xbf16, #tpu.memory_space<vmem>>, vector<4x384xbf16>,
    %4 = vector.extract_strided_slice %1 {offsets = [0, 1], sizes = [4, 384], strides = [1, 1]} : vector<4x512xbf16> to vector<4x384xbf16>
    %c4 = arith.constant 4 : index
    %c0_4 = arith.constant 0 : index
    %5 = vector.load %arg5[%c4, %c0_4] : memref<36x384xbf16, #tpu.memory_space<vmem>>, vector<4x384xbf16>
    tpu.vector_store %arg5[%c4, %c0_4], %4 {strides = array<i32>} : memref<36x384xbf16, #tpu.memory_space<vmem>>, vector<4x384xbf16>,
    %6 = vector.extract_strided_slice %1 {offsets = [0, 2], sizes = [4, 384], strides = [1, 1]} : vector<4x512xbf16> to vector<4x384xbf16>
    %c8 = arith.constant 8 : index
    %c0_5 = arith.constant 0 : index
    %7 = vector.load %arg5[%c8, %c0_5] : memref<36x384xbf16, #tpu.memory_space<vmem>>, vector<4x384xbf16>
    tpu.vector_store %arg5[%c8, %c0_5], %6 {strides = array<i32>} : memref<36x384xbf16, #tpu.memory_space<vmem>>, vector<4x384xbf16>,
    %8 = vector.extract_strided_slice %1 {offsets = [0, 18], sizes = [4, 384], strides = [1, 1]} : vector<4x512xbf16> to vector<4x384xbf16>
    %c12 = arith.constant 12 : index
    %c0_6 = arith.constant 0 : index
    %9 = vector.load %arg5[%c12, %c0_6] : memref<36x384xbf16, #tpu.memory_space<vmem>>, vector<4x384xbf16>
    tpu.vector_store %arg5[%c12, %c0_6], %8 {strides = array<i32>} : memref<36x384xbf16, #tpu.memory_space<vmem>>, vector<4x384xbf16>,
    %10 = vector.extract_strided_slice %1 {offsets = [0, 19], sizes = [4, 384], strides = [1, 1]} : vector<4x512xbf16> to vector<4x384xbf16>
    %c16 = arith.constant 16 : index
    %c0_7 = arith.constant 0 : index
    %11 = vector.load %arg5[%c16, %c0_7] : memref<36x384xbf16, #tpu.memory_space<vmem>>, vector<4x384xbf16>
    tpu.vector_store %arg5[%c16, %c0_7], %10 {strides = array<i32>} : memref<36x384xbf16, #tpu.memory_space<vmem>>, vector<4x384xbf16>,
    %12 = vector.extract_strided_slice %1 {offsets = [0, 20], sizes = [4, 384], strides = [1, 1]} : vector<4x512xbf16> to vector<4x384xbf16>
    %c20 = arith.constant 20 : index
    %c0_8 = arith.constant 0 : index
    %13 = vector.load %arg5[%c20, %c0_8] : memref<36x384xbf16, #tpu.memory_space<vmem>>, vector<4x384xbf16>
    tpu.vector_store %arg5[%c20, %c0_8], %12 {strides = array<i32>} : memref<36x384xbf16, #tpu.memory_space<vmem>>, vector<4x384xbf16>,
    %14 = vector.extract_strided_slice %1 {offsets = [0, 36], sizes = [4, 384], strides = [1, 1]} : vector<4x512xbf16> to vector<4x384xbf16>
    %c24 = arith.constant 24 : index
    %c0_9 = arith.constant 0 : index
    %15 = vector.load %arg5[%c24, %c0_9] : memref<36x384xbf16, #tpu.memory_space<vmem>>, vector<4x384xbf16>
    tpu.vector_store %arg5[%c24, %c0_9], %14 {strides = array<i32>} : memref<36x384xbf16, #tpu.memory_space<vmem>>, vector<4x384xbf16>,
    %16 = vector.extract_strided_slice %1 {offsets = [0, 37], sizes = [4, 384], strides = [1, 1]} : vector<4x512xbf16> to vector<4x384xbf16>
    %c28 = arith.constant 28 : index
    %c0_10 = arith.constant 0 : index
    %17 = vector.load %arg5[%c28, %c0_10] : memref<36x384xbf16, #tpu.memory_space<vmem>>, vector<4x384xbf16>
    tpu.vector_store %arg5[%c28, %c0_10], %16 {strides = array<i32>} : memref<36x384xbf16, #tpu.memory_space<vmem>>, vector<4x384xbf16>,
    %18 = vector.extract_strided_slice %1 {offsets = [0, 38], sizes = [4, 384], strides = [1, 1]} : vector<4x512xbf16> to vector<4x384xbf16>
    %c32 = arith.constant 32 : index
    %c0_11 = arith.constant 0 : index
    %19 = vector.load %arg5[%c32, %c0_11] : memref<36x384xbf16, #tpu.memory_space<vmem>>, vector<4x384xbf16>
    tpu.vector_store %arg5[%c32, %c0_11], %18 {strides = array<i32>} : memref<36x384xbf16, #tpu.memory_space<vmem>>, vector<4x384xbf16>,
    %c0_12 = arith.constant 0 : index
    %c0_13 = arith.constant 0 : index
    %20 = vector.load %arg2[%c0_12, %c0_13] : memref<8x36xbf16, #tpu.memory_space<vmem>>, vector<8x36xbf16>
    %c0_14 = arith.constant 0 : index
    %c0_15 = arith.constant 0 : index
    %21 = vector.load %arg5[%c0_14, %c0_15] : memref<36x384xbf16, #tpu.memory_space<vmem>>, vector<36x384xbf16>
    %cst = arith.constant dense<0.000000e+00> : vector<8x384xf32>
    %22 = tpu.matmul %20, %21, %cst {dimension_numbers = #tpu.dot_dimension_numbers<[1], [0], [0], [1], [0, 0, 1, 1], [], []>} : vector<8x36xbf16>, vector<36x384xbf16>, vector<8x384xf32> -> vector<8x384xf32>
    %23 = tpu.iota {dimensions = array<i32: 1>} : vector<1x384xi32>
    %24 = arith.sitofp %23 : vector<1x384xi32> to vector<1x384xf32>
    %cst_16 = arith.constant 1.800000e+01 : f32
    %25 = vector.broadcast %cst_16 : f32 to vector<1x384xf32>
    %26 = arith.divf %24, %25 : vector<1x384xf32>
    %27 = math.floor %26 : vector<1x384xf32>
    %cst_17 = arith.constant 1.800000e+01 : f32
    %28 = vector.broadcast %cst_17 : f32 to vector<1x384xf32>
    %29 = arith.mulf %27, %28 : vector<1x384xf32>
    %30 = arith.subf %24, %29 : vector<1x384xf32>
    %cst_18 = arith.constant 3.240000e+02 : f32
    %31 = vector.broadcast %cst_18 : f32 to vector<1x384xf32>
    %32 = arith.cmpf olt, %24, %31 : vector<1x384xf32>
    %cst_19 = arith.constant 1.500000e+01 : f32
    %33 = vector.broadcast %cst_19 : f32 to vector<1x384xf32>
    %34 = arith.cmpf ole, %27, %33 : vector<1x384xf32>
    %35 = arith.andi %32, %34 : vector<1x384xi1>
    %cst_20 = arith.constant 1.500000e+01 : f32
    %36 = vector.broadcast %cst_20 : f32 to vector<1x384xf32>
    %37 = arith.cmpf ole, %30, %36 : vector<1x384xf32>
    %38 = arith.andi %35, %37 : vector<1x384xi1>
    %39 = arith.extui %38 : vector<1x384xi1> to vector<1x384xi32>
    %40 = arith.sitofp %39 : vector<1x384xi32> to vector<1x384xf32>
    %41 = vector.broadcast %40 : vector<1x384xf32> to vector<8x384xf32>
    %42 = arith.mulf %22, %41 : vector<8x384xf32>
    %cst_21 = arith.constant dense<0.000000e+00> : vector<8xf32>
    %43 = vector.multi_reduction <add>, %42, %cst_21 [1] : vector<8x384xf32> to vector<8xf32>
    %44 = vector.shape_cast %43 : vector<8xf32> to vector<8x1xf32>
    %45 = arith.mulf %42, %22 : vector<8x384xf32>
    %cst_22 = arith.constant dense<0.000000e+00> : vector<8xf32>
    %46 = vector.multi_reduction <add>, %45, %cst_22 [1] : vector<8x384xf32> to vector<8xf32>
    %47 = vector.shape_cast %46 : vector<8xf32> to vector<8x1xf32>
    %cst_23 = arith.constant 3.906250e-03 : f32
    %48 = vector.broadcast %cst_23 : f32 to vector<8x1xf32>
    %49 = arith.mulf %44, %48 : vector<8x1xf32>
    %cst_24 = arith.constant 3.906250e-03 : f32
    %50 = vector.broadcast %cst_24 : f32 to vector<8x1xf32>
    %51 = arith.mulf %47, %50 : vector<8x1xf32>
    %52 = arith.mulf %49, %49 : vector<8x1xf32>
    %53 = arith.subf %51, %52 : vector<8x1xf32>
    %cst_25 = arith.constant 0.000000e+00 : f32
    %54 = vector.broadcast %cst_25 : f32 to vector<8x1xf32>
    %55 = arith.maximumf %53, %54 : vector<8x1xf32>
    %c0_26 = arith.constant 0 : index
    %c0_27 = arith.constant 0 : index
    %56 = vector.load %arg3[%c0_26, %c0_27] : memref<8x2xf32, #tpu.memory_space<vmem>>, vector<8x1xf32>
    %c0_28 = arith.constant 0 : index
    %c1 = arith.constant 1 : index
    %57 = vector.load %arg3[%c0_28, %c1] : memref<8x2xf32, #tpu.memory_space<vmem>>, vector<8x1xf32>
    %cst_29 = arith.constant 9.99999974E-6 : f32
    %58 = vector.broadcast %cst_29 : f32 to vector<8x1xf32>
    %59 = arith.addf %55, %58 : vector<8x1xf32>
    %60 = math.rsqrt %59 : vector<8x1xf32>
    %61 = arith.mulf %56, %60 : vector<8x1xf32>
    %62 = arith.mulf %49, %61 : vector<8x1xf32>
    %63 = arith.subf %57, %62 : vector<8x1xf32>
    %64 = vector.broadcast %61 : vector<8x1xf32> to vector<8x384xf32>
    %65 = arith.mulf %22, %64 : vector<8x384xf32>
    %66 = vector.broadcast %63 : vector<8x1xf32> to vector<8x384xf32>
    %67 = arith.addf %65, %66 : vector<8x384xf32>
    %c0_30 = arith.constant 0 : index
    %c0_31 = arith.constant 0 : index
    %c0_32 = arith.constant 0 : index
    %68 = vector.load %arg4[%c0_30, %c0_31, %c0_32] : memref<1x8x384xf32, #tpu.memory_space<vmem>>, vector<1x8x384xf32>
    %69 = vector.shape_cast %68 : vector<1x8x384xf32> to vector<8x384xf32>
    %70 = vector.shape_cast %67 : vector<8x384xf32> to vector<1x8x384xf32>
    tpu.vector_store %arg4[%c0_30, %c0_31, %c0_32], %70 {strides = array<i32>} : memref<1x8x384xf32, #tpu.memory_space<vmem>>, vector<1x8x384xf32>,
    return
  }
  func.func @transform_0(%arg0: i32) -> (i32, i32, i32) {
    %c0_i32 = arith.constant 0 : i32
    %c0_i32_0 = arith.constant 0 : i32
    %c0_i32_1 = arith.constant 0 : i32
    return %arg0, %c0_i32, %c0_i32_0 : i32, i32, i32
  }
  func.func @transform_1(%arg0: i32) -> (i32, i32) {
    %c0_i32 = arith.constant 0 : i32
    %c0_i32_0 = arith.constant 0 : i32
    %c0_i32_1 = arith.constant 0 : i32
    return %c0_i32, %c0_i32_0 : i32, i32
  }
  func.func @transform_2(%arg0: i32) -> (i32, i32) {
    %c0_i32 = arith.constant 0 : i32
    %c0_i32_0 = arith.constant 0 : i32
    %c0_i32_1 = arith.constant 0 : i32
    return %c0_i32, %c0_i32_0 : i32, i32
  }
  func.func @transform_3(%arg0: i32) -> (i32, i32, i32) {
    %c0_i32 = arith.constant 0 : i32
    %c0_i32_0 = arith.constant 0 : i32
    %c0_i32_1 = arith.constant 0 : i32
    return %arg0, %c0_i32, %c0_i32_0 : i32, i32, i32
  }
}

module attributes {stable_mosaic.version = 11 : i64} {
  func.func @conv_instnorm_kernel(%arg0: i32, %arg1: memref<1x4x512xbf16, #tpu.memory_space<vmem>>, %arg2: memref<8x36xbf16, #tpu.memory_space<vmem>>, %arg3: memref<8x2xf32, #tpu.memory_space<vmem>>, %arg4: memref<1x8x384xf32, #tpu.memory_space<vmem>>, %arg5: memref<36x384xbf16, #tpu.memory_space<vmem>>) attributes {dimension_semantics = [#tpu.dimension_semantics<parallel>], iteration_bounds = array<i64: 2>, scalar_prefetch = 0 : i64, scratch_operands = 1 : i64, tpu.core_type = #tpu.core_type<tc>, window_params = [{transform_indices = @transform_0, window_bounds = array<i64: 1, 4, 512>}, {pipeline_mode = #tpu.pipeline_mode<synchronous>, transform_indices = @transform_1, window_bounds = array<i64: 8, 36>}, {pipeline_mode = #tpu.pipeline_mode<synchronous>, transform_indices = @transform_2, window_bounds = array<i64: 8, 2>}, {transform_indices = @transform_3, window_bounds = array<i64: 1, 8, 384>}]} {
    %c0 = arith.constant 0 : index
    %c0_0 = arith.constant 0 : index
    %c0_1 = arith.constant 0 : index
    %0 = vector.load %arg1[%c0, %c0_0, %c0_1] : memref<1x4x512xbf16, #tpu.memory_space<vmem>>, vector<1x4x512xbf16>
    %1 = vector.shape_cast %0 : vector<1x4x512xbf16> to vector<4x512xbf16>
    %2 = vector.extract_strided_slice %1 {offsets = [0, 0], sizes = [4, 384], strides = [1, 1]} : vector<4x512xbf16> to vector<4x384xbf16>
    %c0_2 = arith.constant 0 : index
    %c0_3 = arith.constant 0 : index
    %3 = vector.load %arg5[%c0_2, %c0_3] : memref<36x384xbf16, #tpu.memory_space<vmem>>, vector<4x384xbf16>
    tpu.vector_store %arg5[%c0_2, %c0_3], %2 {strides = array<i32>} : memref<36x384xbf16, #tpu.memory_space<vmem>>, vector<4x384xbf16>,
    %4 = vector.extract_strided_slice %1 {offsets = [0, 1], sizes = [4, 384], strides = [1, 1]} : vector<4x512xbf16> to vector<4x384xbf16>
    %c4 = arith.constant 4 : index
    %c0_4 = arith.constant 0 : index
    %5 = vector.load %arg5[%c4, %c0_4] : memref<36x384xbf16, #tpu.memory_space<vmem>>, vector<4x384xbf16>
    tpu.vector_store %arg5[%c4, %c0_4], %4 {strides = array<i32>} : memref<36x384xbf16, #tpu.memory_space<vmem>>, vector<4x384xbf16>,
    %6 = vector.extract_strided_slice %1 {offsets = [0, 2], sizes = [4, 384], strides = [1, 1]} : vector<4x512xbf16> to vector<4x384xbf16>
    %c8 = arith.constant 8 : index
    %c0_5 = arith.constant 0 : index
    %7 = vector.load %arg5[%c8, %c0_5] : memref<36x384xbf16, #tpu.memory_space<vmem>>, vector<4x384xbf16>
    tpu.vector_store %arg5[%c8, %c0_5], %6 {strides = array<i32>} : memref<36x384xbf16, #tpu.memory_space<vmem>>, vector<4x384xbf16>,
    %8 = vector.extract_strided_slice %1 {offsets = [0, 18], sizes = [4, 384], strides = [1, 1]} : vector<4x512xbf16> to vector<4x384xbf16>
    %c12 = arith.constant 12 : index
    %c0_6 = arith.constant 0 : index
    %9 = vector.load %arg5[%c12, %c0_6] : memref<36x384xbf16, #tpu.memory_space<vmem>>, vector<4x384xbf16>
    tpu.vector_store %arg5[%c12, %c0_6], %8 {strides = array<i32>} : memref<36x384xbf16, #tpu.memory_space<vmem>>, vector<4x384xbf16>,
    %10 = vector.extract_strided_slice %1 {offsets = [0, 19], sizes = [4, 384], strides = [1, 1]} : vector<4x512xbf16> to vector<4x384xbf16>
    %c16 = arith.constant 16 : index
    %c0_7 = arith.constant 0 : index
    %11 = vector.load %arg5[%c16, %c0_7] : memref<36x384xbf16, #tpu.memory_space<vmem>>, vector<4x384xbf16>
    tpu.vector_store %arg5[%c16, %c0_7], %10 {strides = array<i32>} : memref<36x384xbf16, #tpu.memory_space<vmem>>, vector<4x384xbf16>,
    %12 = vector.extract_strided_slice %1 {offsets = [0, 20], sizes = [4, 384], strides = [1, 1]} : vector<4x512xbf16> to vector<4x384xbf16>
    %c20 = arith.constant 20 : index
    %c0_8 = arith.constant 0 : index
    %13 = vector.load %arg5[%c20, %c0_8] : memref<36x384xbf16, #tpu.memory_space<vmem>>, vector<4x384xbf16>
    tpu.vector_store %arg5[%c20, %c0_8], %12 {strides = array<i32>} : memref<36x384xbf16, #tpu.memory_space<vmem>>, vector<4x384xbf16>,
    %14 = vector.extract_strided_slice %1 {offsets = [0, 36], sizes = [4, 384], strides = [1, 1]} : vector<4x512xbf16> to vector<4x384xbf16>
    %c24 = arith.constant 24 : index
    %c0_9 = arith.constant 0 : index
    %15 = vector.load %arg5[%c24, %c0_9] : memref<36x384xbf16, #tpu.memory_space<vmem>>, vector<4x384xbf16>
    tpu.vector_store %arg5[%c24, %c0_9], %14 {strides = array<i32>} : memref<36x384xbf16, #tpu.memory_space<vmem>>, vector<4x384xbf16>,
    %16 = vector.extract_strided_slice %1 {offsets = [0, 37], sizes = [4, 384], strides = [1, 1]} : vector<4x512xbf16> to vector<4x384xbf16>
    %c28 = arith.constant 28 : index
    %c0_10 = arith.constant 0 : index
    %17 = vector.load %arg5[%c28, %c0_10] : memref<36x384xbf16, #tpu.memory_space<vmem>>, vector<4x384xbf16>
    tpu.vector_store %arg5[%c28, %c0_10], %16 {strides = array<i32>} : memref<36x384xbf16, #tpu.memory_space<vmem>>, vector<4x384xbf16>,
    %18 = vector.extract_strided_slice %1 {offsets = [0, 38], sizes = [4, 384], strides = [1, 1]} : vector<4x512xbf16> to vector<4x384xbf16>
    %c32 = arith.constant 32 : index
    %c0_11 = arith.constant 0 : index
    %19 = vector.load %arg5[%c32, %c0_11] : memref<36x384xbf16, #tpu.memory_space<vmem>>, vector<4x384xbf16>
    tpu.vector_store %arg5[%c32, %c0_11], %18 {strides = array<i32>} : memref<36x384xbf16, #tpu.memory_space<vmem>>, vector<4x384xbf16>,
    %c0_12 = arith.constant 0 : index
    %c0_13 = arith.constant 0 : index
    %20 = vector.load %arg2[%c0_12, %c0_13] : memref<8x36xbf16, #tpu.memory_space<vmem>>, vector<8x36xbf16>
    %c0_14 = arith.constant 0 : index
    %c0_15 = arith.constant 0 : index
    %21 = vector.load %arg5[%c0_14, %c0_15] : memref<36x384xbf16, #tpu.memory_space<vmem>>, vector<36x384xbf16>
    %cst = arith.constant dense<0.000000e+00> : vector<8x384xf32>
    %22 = tpu.matmul %20, %21, %cst {dimension_numbers = #tpu.dot_dimension_numbers<[1], [0], [0], [1], [0, 0, 1, 1], [], []>} : vector<8x36xbf16>, vector<36x384xbf16>, vector<8x384xf32> -> vector<8x384xf32>
    %23 = tpu.iota {dimensions = array<i32: 1>} : vector<1x384xi32>
    %24 = arith.sitofp %23 : vector<1x384xi32> to vector<1x384xf32>
    %cst_16 = arith.constant 1.800000e+01 : f32
    %25 = vector.broadcast %cst_16 : f32 to vector<1x384xf32>
    %26 = arith.divf %24, %25 : vector<1x384xf32>
    %27 = math.floor %26 : vector<1x384xf32>
    %cst_17 = arith.constant 1.800000e+01 : f32
    %28 = vector.broadcast %cst_17 : f32 to vector<1x384xf32>
    %29 = arith.mulf %27, %28 : vector<1x384xf32>
    %30 = arith.subf %24, %29 : vector<1x384xf32>
    %cst_18 = arith.constant 3.240000e+02 : f32
    %31 = vector.broadcast %cst_18 : f32 to vector<1x384xf32>
    %32 = arith.cmpf olt, %24, %31 : vector<1x384xf32>
    %cst_19 = arith.constant 1.500000e+01 : f32
    %33 = vector.broadcast %cst_19 : f32 to vector<1x384xf32>
    %34 = arith.cmpf ole, %27, %33 : vector<1x384xf32>
    %35 = arith.andi %32, %34 : vector<1x384xi1>
    %cst_20 = arith.constant 1.500000e+01 : f32
    %36 = vector.broadcast %cst_20 : f32 to vector<1x384xf32>
    %37 = arith.cmpf ole, %30, %36 : vector<1x384xf32>
    %38 = arith.andi %35, %37 : vector<1x384xi1>
    %39 = arith.extui %38 : vector<1x384xi1> to vector<1x384xi32>
    %40 = arith.sitofp %39 : vector<1x384xi32> to vector<1x384xf32>
    %41 = vector.broadcast %40 : vector<1x384xf32> to vector<8x384xf32>
    %42 = arith.mulf %22, %41 : vector<8x384xf32>
    %cst_21 = arith.constant dense<0.000000e+00> : vector<8xf32>
    %43 = vector.multi_reduction <add>, %42, %cst_21 [1] : vector<8x384xf32> to vector<8xf32>
    %44 = vector.shape_cast %43 : vector<8xf32> to vector<8x1xf32>
    %45 = arith.mulf %42, %22 : vector<8x384xf32>
    %cst_22 = arith.constant dense<0.000000e+00> : vector<8xf32>
    %46 = vector.multi_reduction <add>, %45, %cst_22 [1] : vector<8x384xf32> to vector<8xf32>
    %47 = vector.shape_cast %46 : vector<8xf32> to vector<8x1xf32>
    %cst_23 = arith.constant 3.906250e-03 : f32
    %48 = vector.broadcast %cst_23 : f32 to vector<8x1xf32>
    %49 = arith.mulf %44, %48 : vector<8x1xf32>
    %cst_24 = arith.constant 3.906250e-03 : f32
    %50 = vector.broadcast %cst_24 : f32 to vector<8x1xf32>
    %51 = arith.mulf %47, %50 : vector<8x1xf32>
    %52 = arith.mulf %49, %49 : vector<8x1xf32>
    %53 = arith.subf %51, %52 : vector<8x1xf32>
    %cst_25 = arith.constant 0.000000e+00 : f32
    %54 = vector.broadcast %cst_25 : f32 to vector<8x1xf32>
    %55 = arith.maximumf %53, %54 : vector<8x1xf32>
    %c0_26 = arith.constant 0 : index
    %c0_27 = arith.constant 0 : index
    %56 = vector.load %arg3[%c0_26, %c0_27] : memref<8x2xf32, #tpu.memory_space<vmem>>, vector<8x1xf32>
    %c0_28 = arith.constant 0 : index
    %c1 = arith.constant 1 : index
    %57 = vector.load %arg3[%c0_28, %c1] : memref<8x2xf32, #tpu.memory_space<vmem>>, vector<8x1xf32>
    %cst_29 = arith.constant 9.99999974E-6 : f32
    %58 = vector.broadcast %cst_29 : f32 to vector<8x1xf32>
    %59 = arith.addf %55, %58 : vector<8x1xf32>
    %60 = math.rsqrt %59 : vector<8x1xf32>
    %61 = arith.mulf %56, %60 : vector<8x1xf32>
    %62 = arith.mulf %49, %61 : vector<8x1xf32>
    %63 = arith.subf %57, %62 : vector<8x1xf32>
    %64 = vector.broadcast %61 : vector<8x1xf32> to vector<8x384xf32>
    %65 = arith.mulf %22, %64 : vector<8x384xf32>
    %66 = vector.broadcast %63 : vector<8x1xf32> to vector<8x384xf32>
    %67 = arith.addf %65, %66 : vector<8x384xf32>
    %c0_30 = arith.constant 0 : index
    %c0_31 = arith.constant 0 : index
    %c0_32 = arith.constant 0 : index
    %68 = vector.load %arg4[%c0_30, %c0_31, %c0_32] : memref<1x8x384xf32, #tpu.memory_space<vmem>>, vector<1x8x384xf32>
    %69 = vector.shape_cast %68 : vector<1x8x384xf32> to vector<8x384xf32>
    %70 = vector.shape_cast %67 : vector<8x384xf32> to vector<1x8x384xf32>
    tpu.vector_store %arg4[%c0_30, %c0_31, %c0_32], %70 {strides = array<i32>} : memref<1x8x384xf32, #tpu.memory_space<vmem>>, vector<1x8x384xf32>,
    return
  }
  func.func @transform_0(%arg0: i32) -> (i32, i32, i32) {
    %c0_i32 = arith.constant 0 : i32
    %c0_i32_0 = arith.constant 0 : i32
    %c0_i32_1 = arith.constant 0 : i32
    return %arg0, %c0_i32, %c0_i32_0 : i32, i32, i32
  }
  func.func @transform_1(%arg0: i32) -> (i32, i32) {
    %c0_i32 = arith.constant 0 : i32
    %c0_i32_0 = arith.constant 0 : i32
    %c0_i32_1 = arith.constant 0 : i32
    return %c0_i32, %c0_i32_0 : i32, i32
  }
  func.func @transform_2(%arg0: i32) -> (i32, i32) {
    %c0_i32 = arith.constant 0 : i32
    %c0_i32_0 = arith.constant 0 : i32
    %c0_i32_1 = arith.constant 0 : i32
    return %c0_i32, %c0_i32_0 : i32, i32
  }
  func.func @transform_3(%arg0: i32) -> (i32, i32, i32) {
    %c0_i32 = arith.constant 0 : i32
    %c0_i32_0 = arith.constant 0 : i32
    %c0_i32_1 = arith.constant 0 : i32
    return %arg0, %c0_i32, %c0_i32_0 : i32, i32, i32
  }
}

</mosaic_0001>

<llo_original>
// kernel: tpu_custom_call.1
$region0: #{tpu_custom_call.1}
  #allocation0 [shape = 'u32[]', space=smem, size = 0x4, offset = 0x4, fixed_abs, tag = 'smem constant byte address 0x4 - core index']
  #allocation1 [shape = 'u32[72,128]{1,0:T(1,128)}', space=vmem, size = 0x9000, scoped, tag = 'internal scratch']
  #allocation2 [shape = 'bf16[36,384]{1,0:T(8,128)(2,1)}', space=vmem, size = 0x7800, scoped, tag = 'scratch operand']
  %s0 = inlined_call_operand.hbm [shape: bf16[2,4,512], index: 0, kind: input, shape index: {}]
  %s1 = inlined_call_operand.vmem [shape: bf16[8,36], index: 1, kind: input, shape index: {}]
  %s2 = inlined_call_operand.vmem [shape: f32[8,2], index: 2, kind: input, shape index: {}]
  %s3 = inlined_call_operand.hbm [shape: f32[2,8,384], index: 3, kind: output, shape index: {}]
  %s4 = sld [smem:[#allocation0]]
  $region49: #{tpu_custom_call.1} parent=0
    _
  %s6 = ssub.s32 1, %s4
  %s7 = scalar_select 0, %s6, %s4
  $region1: #{tpu_custom_call.1} parent=0
    #allocation3 [shape = 'u8[8192]{0}', space=vmem, size = 0x2000, scoped, tag = 'input window, operand 0']
    #allocation4 [shape = 's32[2]{0}', space=sflag, size = 0x8, scoped, tag = 'scoped memory for tpu_custom_call.1']
    #allocation5 [shape = 's32[2]{0}', space=sflag, size = 0x8, scoped, tag = 'scoped memory for tpu_custom_call.1']
    #allocation6 [shape = 'u8[24576]{0}', space=vmem, size = 0x6000, scoped, tag = 'output window, operand 0']
    %8 = vsyncpa [#allocation4], 0
    %s9 = scalar_lea.sflag [#allocation4], 1
    %10 = vsyncpa %s9, 0
    %11 = vsyncpa [#allocation5], 0
    %s12 = scalar_lea.sflag [#allocation5], 1
    %13 = vsyncpa %s12, 0
    loop: start=0, step=1, limit=4
    $region2: #{tpu_custom_call.1} parent=1 // loop_pre_header
      _
    $region3: #{tpu_custom_call.1} parent=1 // loop_header
      %s15 = sphi 0, %s19
      %p16 = scmp.ge.s32.totalorder %s15, 4
      %s25 = sphi 0, %s27
      %s28 = sphi 0, %s25
      %s29 = sphi 0, %s28
      %s45 = sphi 0, %s29
      %s49 = sphi 0, %s49
      %s51 = sphi 0, %s49
      %s52 = sphi 0, %s51
      %s66 = sphi 0, %s52
      %s70 = sphi 0, %s70
      %s72 = sphi 0, %s70
      %s73 = sphi 0, %s72
      %s87 = sphi 0, %s73
      %s93 = sphi 0, %s95
      %s96 = sphi 0, %s93
      %s97 = sphi 0, %s96
      %s113 = sphi 0, %s97
    $region4: #{tpu_custom_call.1} parent=1 // loop_header_branch
      %18 = sbr.rel (%p16) target = $region8
    $region5: #{tpu_custom_call.1} parent=1 // loop_body
      %s20 = ssub.s32 %s15, 1
      %s21 = ssub.s32 %s15, 2
      %s22 = sadd.s32 %s15, 1
      %s23 = ssub.s32 %s15, %s22
      %p24 = scmp.eq.s32.totalorder %s23, 0
      %s26 = sadd.s32 %s25, 1
      %s27 = scalar_select %p24, %s25, %s26
      %p30 = pneg %p24
      %p31 = scmp.eq.s32.totalorder %s15, 1
      %p32 = por %p30, %p31
      %p33 = scmp.ne.s32.totalorder %s25, %s28
      %p34 = scmp.eq.s32.totalorder %s15, 0
      %p35 = por %p33, %p34
      %p36 = scmp.ne.s32.totalorder %s25, %s28
      %p37 = scmp.eq.s32.totalorder %s20, 1
      %p38 = por %p36, %p37
      %p39 = scmp.ne.s32.totalorder %s28, %s29
      %p40 = scmp.eq.s32.totalorder %s20, 0
      %p41 = por %p39, %p40
      %p42 = scmp.ne.s32.totalorder %s28, %s29
      %p43 = scmp.eq.s32.totalorder %s21, 1
      %p44 = por %p42, %p43
      %p46 = scmp.ne.s32.totalorder %s29, %s45
      %p47 = scmp.eq.s32.totalorder %s21, 0
      %p48 = por %p46, %p47
      %s50 = sadd.s32 %s49, 1
      %p53 = scmp.eq.s32.totalorder %s15, 1
      %p54 = scmp.ne.s32.totalorder %s49, %s51
      %p55 = scmp.eq.s32.totalorder %s15, 0
      %p56 = por %p54, %p55
      %p57 = scmp.ne.s32.totalorder %s49, %s51
      %p58 = scmp.eq.s32.totalorder %s20, 1
      %p59 = por %p57, %p58
      %p60 = scmp.ne.s32.totalorder %s51, %s52
      %p61 = scmp.eq.s32.totalorder %s20, 0
      %p62 = por %p60, %p61
      %p63 = scmp.ne.s32.totalorder %s51, %s52
      %p64 = scmp.eq.s32.totalorder %s21, 1
      %p65 = por %p63, %p64
      %p67 = scmp.ne.s32.totalorder %s52, %s66
      %p68 = scmp.eq.s32.totalorder %s21, 0
      %p69 = por %p67, %p68
      %s71 = sadd.s32 %s70, 1
      %p74 = scmp.eq.s32.totalorder %s15, 1
      %p75 = scmp.ne.s32.totalorder %s70, %s72
      %p76 = scmp.eq.s32.totalorder %s15, 0
      %p77 = por %p75, %p76
      %p78 = scmp.ne.s32.totalorder %s70, %s72
      %p79 = scmp.eq.s32.totalorder %s20, 1
      %p80 = por %p78, %p79
      %p81 = scmp.ne.s32.totalorder %s72, %s73
      %p82 = scmp.eq.s32.totalorder %s20, 0
      %p83 = por %p81, %p82
      %p84 = scmp.ne.s32.totalorder %s72, %s73
      %p85 = scmp.eq.s32.totalorder %s21, 1
      %p86 = por %p84, %p85
      %p88 = scmp.ne.s32.totalorder %s73, %s87
      %p89 = scmp.eq.s32.totalorder %s21, 0
      %p90 = por %p88, %p89
      %s91 = ssub.s32 %s15, %s22
      %p92 = scmp.eq.s32.totalorder %s91, 0
      %s94 = sadd.s32 %s93, 1
      %s95 = scalar_select %p92, %s93, %s94
      %p98 = pneg %p92
      %p99 = scmp.eq.s32.totalorder %s15, 1
      %p100 = por %p98, %p99
      %p101 = scmp.ne.s32.totalorder %s93, %s96
      %p102 = scmp.eq.s32.totalorder %s15, 0
      %p103 = por %p101, %p102
      %p104 = scmp.ne.s32.totalorder %s93, %s96
      %p105 = scmp.eq.s32.totalorder %s20, 1
      %p106 = por %p104, %p105
      %p107 = scmp.ne.s32.totalorder %s96, %s97
      %p108 = scmp.eq.s32.totalorder %s20, 0
      %p109 = por %p107, %p108
      %p110 = scmp.ne.s32.totalorder %s96, %s97
      %p111 = scmp.eq.s32.totalorder %s21, 1
      %p112 = por %p110, %p111
      %p114 = scmp.ne.s32.totalorder %s97, %s113
      %p115 = scmp.eq.s32.totalorder %s21, 0
      %p116 = por %p114, %p115
      %p117 = scmp.le.s32.totalorder 1, %s15
      %p118 = scmp.lt.s32.totalorder %s15, 3
      %p119 = pnand %p117, %p118
      %p120 = pneg %p119
      // Predicated region
      $region9: #{tpu_custom_call.1} parent=5 // pred_check
        _
      $region10: #{tpu_custom_call.1} parent=5 // pred_check_branch
        %122 = sbr.rel (%p119) target = $region12
      $region11: #{tpu_custom_call.1} parent=5 // pred_region
        %s123 = ssub.s32 %s15, 1
        // Predicated region
        $region13: #{tpu_custom_call.1} parent=11 // pred_check
          %p124 = pneg %p62
        $region14: #{tpu_custom_call.1} parent=11 // pred_check_branch
          %126 = sbr.rel (%p124) target = $region16
        $region15: #{tpu_custom_call.1} parent=11 // pred_region
          _
        $region16: #{tpu_custom_call.1} parent=11 // pred_fallthru
          _
        // Predicated region
        $region17: #{tpu_custom_call.1} parent=11 // pred_check
          %p127 = pneg %p83
        $region18: #{tpu_custom_call.1} parent=11 // pred_check_branch
          %129 = sbr.rel (%p127) target = $region20
        $region19: #{tpu_custom_call.1} parent=11 // pred_region
          _
        $region20: #{tpu_custom_call.1} parent=11 // pred_fallthru
          _
      $region12: #{tpu_custom_call.1} parent=5 // pred_fallthru
        _
      %p130 = scmp.lt.s32.totalorder %s15, 2
      // Predicated region
      $region21: #{tpu_custom_call.1} parent=5 // pred_check
        %p131 = pneg %p130
      $region22: #{tpu_custom_call.1} parent=5 // pred_check_branch
        %133 = sbr.rel (%p131) target = $region24
      $region23: #{tpu_custom_call.1} parent=5 // pred_region
        // Predicated region
        $region25: #{tpu_custom_call.1} parent=23 // pred_check
          %p134 = pneg %p35
        $region26: #{tpu_custom_call.1} parent=23 // pred_check_branch
          %136 = sbr.rel (%p134) target = $region28
        $region27: #{tpu_custom_call.1} parent=23 // pred_region
          %s137 = sand.u32 %s25, 1
          %s138 = scalar_lea.sflag [#allocation4], %s137
          %s139 = sand.u32 %s25, 1
          %s140 = smul.addr %s139, 8
          %s141 = scalar_lea.vmem [#allocation3], %s140
          %143 = vsyncadd %s138, 0
          %s144 = smul.addr %s15, 4
          %s145 = smul.addr %s144, 2
          %s146 = scalar_lea.hbm %s0, %s145
          %s148 = sshll.u32 %s146, 4
          %s149 = int_to_ptr.hbm [resolvable:$true] %s148
          %s150 = sshll.u32 %s141, 4
          %s151 = int_to_ptr.vmem [resolvable:$true] %s150
          %153 = dma.hbm_to_vmem [thread:$0]  %s149, 128, %s151, %s138
        $region28: #{tpu_custom_call.1} parent=23 // pred_fallthru
          _
      $region24: #{tpu_custom_call.1} parent=5 // pred_fallthru
        _
      %p154 = scmp.le.s32.totalorder 1, %s15
      %p155 = scmp.lt.s32.totalorder %s15, 3
      %p156 = pnand %p154, %p155
      %p157 = pneg %p156
      // Predicated region
      $region29: #{tpu_custom_call.1} parent=5 // pred_check
        _
      $region30: #{tpu_custom_call.1} parent=5 // pred_check_branch
        %159 = sbr.rel (%p156) target = $region32
      $region31: #{tpu_custom_call.1} parent=5 // pred_region
        %s160 = ssub.s32 %s15, 1
        %s161 = sand.u32 %s28, 1
        %s162 = scalar_lea.sflag [#allocation4], %s161
        %s163 = sand.u32 %s28, 1
        %s164 = smul.addr %s163, 8
        %s165 = scalar_lea.vmem [#allocation3], %s164
        // Predicated region
        $region33: #{tpu_custom_call.1} parent=31 // pred_check
          %p166 = pneg %p41
        $region34: #{tpu_custom_call.1} parent=31 // pred_check_branch
          %168 = sbr.rel (%p166) target = $region36
        $region35: #{tpu_custom_call.1} parent=31 // pred_region
          %170 = dma.done %s162, 128
        $region36: #{tpu_custom_call.1} parent=31 // pred_fallthru
          _
        %s171 = sand.u32 %s28, 1
        %s172 = scalar_lea.sflag [#allocation4], %s171
        %s173 = sand.u32 %s28, 1
        %s174 = smul.addr %s173, 8
        %s175 = scalar_lea.vmem [#allocation3], %s174
        %p176 = pneg %p41
        %p177 = pneg %p38
        %p178 = pneg %p62
        %p179 = pneg %p59
        %p180 = pneg %p83
        %p181 = pneg %p80
        %p182 = pneg %p109
        %p183 = pneg %p106
        %s184 = sand.u32 %s96, 1
        %s185 = scalar_lea.sflag [#allocation5], %s184
        %s186 = sand.u32 %s96, 1
        %s187 = smul.addr %s186, 24
        %s188 = scalar_lea.vmem [#allocation6], %s187
        %v190 = vld [vmem:[%s165] sm:$0xff]
        %192 = vst [vmem:[#allocation1] ss:$2 sm:$0xff] %v190
        %v193 = vld.sshfl [vmem:[#allocation1] sm:$0xff pattern:$0x75643120]
        %v194 = vld.sshfl [vmem:[#allocation1 + $0x8] sm:$0xff pattern:$0x75643120]
        %197 = vst [vmem:[#allocation2] sm:$0x33] %v193
        %198 = vst [vmem:[#allocation2 + $0x8] sm:$0x3] %v194
        %s199 = scalar_lea.vmem [#allocation1], 1
        %200 = vst [vmem:[%s199] ss:$2 sm:$0xff] %v190
        %v201 = vld.sshfl [vmem:[#allocation1] sm:$0xff pattern:$0x75643120]
        %v203 = vld.sshfl [vmem:[#allocation1 + $0x8] sm:$0xff pattern:$0x75643120]
        %205 = vrot.lane.b32.xlu0 %v201, 127
        %v206 = vpop.permute.xlu0 %205
        %207 = vrot.lane.b32.xlu0 %v203, 127
        %v208 = vpop.permute.xlu0 %207
        %v209 = vrot.slane %v206, 4
        %v210 = vrot.slane %v208, 4
        %vm211 = vcmask 1043456
        %v212 = vsel %vm211, %v209, %v210
        %vm213 = vcmask 1039360
        %v214 = vsel %vm213, %v206, %v212
        %v215 = vsel %vm213, %v208, %v210
        %218 = vst [vmem:[#allocation2] sm:$0xcc] %v214
        %219 = vst [vmem:[#allocation2 + $0x8] sm:$0xc] %v215
        %220 = vst [vmem:[#allocation1] ss:$2 sm:$0xff] %v190
        %v221 = vld.sshfl [vmem:[#allocation1] sm:$0xff pattern:$0x75643120]
        %v223 = vld.sshfl [vmem:[#allocation1 + $0x8] sm:$0xff pattern:$0x75643120]
        %225 = vrot.lane.b32.xlu0 %v221, 126
        %v226 = vpop.permute.xlu0 %225
        %227 = vrot.lane.b32.xlu0 %v223, 126
        %v228 = vpop.permute.xlu0 %227
        %v229 = vrot.slane %v226, 4
        %v230 = vrot.slane %v228, 4
        %v231 = vsel %vm211, %v229, %v230
        %vm232 = vcmask 1031168
        %v233 = vsel %vm232, %v226, %v231
        %v234 = vsel %vm232, %v228, %v230
        %237 = vst [vmem:[#allocation2 + $0xc] sm:$0x33] %v233
        %238 = vst [vmem:[#allocation2 + $0x14] sm:$0x3] %v234
        %s239 = scalar_lea.vmem [#allocation1], 1
        %240 = vst [vmem:[%s239] ss:$2 sm:$0xff] %v190
        %v241 = vld.sshfl [vmem:[#allocation1] sm:$0xff pattern:$0x75643120]
        %v243 = vld.sshfl [vmem:[#allocation1 + $0x8] sm:$0xff pattern:$0x75643120]
        %245 = vrot.lane.b32.xlu0 %v241, 110
        %v246 = vpop.permute.xlu0 %245
        %247 = vrot.lane.b32.xlu0 %v243, 110
        %v248 = vpop.permute.xlu0 %247
        %v249 = vrot.slane %v246, 4
        %v250 = vrot.slane %v248, 4
        %v251 = vsel %vm211, %v249, %v250
        %vm252 = vcmask 900096
        %v253 = vsel %vm252, %v246, %v251
        %v254 = vsel %vm252, %v248, %v250
        %257 = vst [vmem:[#allocation2 + $0xc] sm:$0xcc] %v253
        %258 = vst [vmem:[#allocation2 + $0x14] sm:$0xc] %v254
        %259 = vst [vmem:[#allocation1] ss:$2 sm:$0xff] %v190
        %v260 = vld.sshfl [vmem:[#allocation1] sm:$0xff pattern:$0x75643120]
        %v262 = vld.sshfl [vmem:[#allocation1 + $0x8] sm:$0xff pattern:$0x75643120]
        %264 = vrot.lane.b32.xlu0 %v260, 109
        %v265 = vpop.permute.xlu0 %264
        %266 = vrot.lane.b32.xlu0 %v262, 109
        %v267 = vpop.permute.xlu0 %266
        %v268 = vrot.slane %v265, 4
        %v269 = vrot.slane %v267, 4
        %v270 = vsel %vm211, %v268, %v269
        %vm271 = vcmask 891904
        %v272 = vsel %vm271, %v265, %v270
        %v273 = vsel %vm271, %v267, %v269
        %276 = vst [vmem:[#allocation2 + $0x18] sm:$0x33] %v272
        %277 = vst [vmem:[#allocation2 + $0x20] sm:$0x3] %v273
        %s278 = scalar_lea.vmem [#allocation1], 1
        %279 = vst [vmem:[%s278] ss:$2 sm:$0xff] %v190
        %v280 = vld.sshfl [vmem:[#allocation1] sm:$0xff pattern:$0x75643120]
        %v282 = vld.sshfl [vmem:[#allocation1 + $0x8] sm:$0xff pattern:$0x75643120]
        %284 = vrot.lane.b32.xlu0 %v280, 108
        %v285 = vpop.permute.xlu0 %284
        %286 = vrot.lane.b32.xlu0 %v282, 108
        %v287 = vpop.permute.xlu0 %286
        %v288 = vrot.slane %v285, 4
        %v289 = vrot.slane %v287, 4
        %v290 = vsel %vm211, %v288, %v289
        %vm291 = vcmask 883712
        %v292 = vsel %vm291, %v285, %v290
        %v293 = vsel %vm291, %v287, %v289
        %296 = vst [vmem:[#allocation2 + $0x18] sm:$0xcc] %v292
        %297 = vst [vmem:[#allocation2 + $0x20] sm:$0xc] %v293
        %298 = vst [vmem:[#allocation1] ss:$2 sm:$0xff] %v190
        %v299 = vld.sshfl [vmem:[#allocation1] sm:$0xff pattern:$0x75643120]
        %v301 = vld.sshfl [vmem:[#allocation1 + $0x8] sm:$0xff pattern:$0x75643120]
        %303 = vrot.lane.b32.xlu0 %v299, 92
        %v304 = vpop.permute.xlu0 %303
        %305 = vrot.lane.b32.xlu0 %v301, 92
        %v306 = vpop.permute.xlu0 %305
        %v307 = vrot.slane %v304, 4
        %v308 = vrot.slane %v306, 4
        %v309 = vsel %vm211, %v307, %v308
        %vm310 = vcmask 752640
        %v311 = vsel %vm310, %v304, %v309
        %v312 = vsel %vm310, %v306, %v308
        %315 = vst [vmem:[#allocation2 + $0x24] sm:$0x33] %v311
        %316 = vst [vmem:[#allocation2 + $0x2c] sm:$0x3] %v312
        %s317 = scalar_lea.vmem [#allocation1], 1
        %318 = vst [vmem:[%s317] ss:$2 sm:$0xff] %v190
        %v319 = vld.sshfl [vmem:[#allocation1] sm:$0xff pattern:$0x75643120]
        %v321 = vld.sshfl [vmem:[#allocation1 + $0x8] sm:$0xff pattern:$0x75643120]
        %323 = vrot.lane.b32.xlu0 %v319, 91
        %v324 = vpop.permute.xlu0 %323
        %325 = vrot.lane.b32.xlu0 %v321, 91
        %v326 = vpop.permute.xlu0 %325
        %v327 = vrot.slane %v324, 4
        %v328 = vrot.slane %v326, 4
        %v329 = vsel %vm211, %v327, %v328
        %vm330 = vcmask 744448
        %v331 = vsel %vm330, %v324, %v329
        %v332 = vsel %vm330, %v326, %v328
        %335 = vst [vmem:[#allocation2 + $0x24] sm:$0xcc] %v331
        %336 = vst [vmem:[#allocation2 + $0x2c] sm:$0xc] %v332
        %337 = vst [vmem:[#allocation1] ss:$2 sm:$0xff] %v190
        %v338 = vld.sshfl [vmem:[#allocation1] sm:$0xff pattern:$0x75643120]
        %v340 = vld.sshfl [vmem:[#allocation1 + $0x8] sm:$0xff pattern:$0x75643120]
        %342 = vrot.lane.b32.xlu0 %v338, 90
        %v343 = vpop.permute.xlu0 %342
        %344 = vrot.lane.b32.xlu0 %v340, 90
        %v345 = vpop.permute.xlu0 %344
        %v346 = vrot.slane %v343, 4
        %v347 = vrot.slane %v345, 4
        %v348 = vsel %vm211, %v346, %v347
        %vm349 = vcmask 736256
        %v350 = vsel %vm349, %v343, %v348
        %v351 = vsel %vm349, %v345, %v347
        %354 = vst [vmem:[#allocation2 + $0x30] sm:$0x33] %v350
        %355 = vst [vmem:[#allocation2 + $0x38] sm:$0x3] %v351
        %v356 = vld [vmem:[%s1] sm:$0xf]
        %v357 = vld [vmem:[#allocation2] sm:$0xff]
        %v358 = vld [vmem:[#allocation2 + $0x8] sm:$0xf]
        %v359 = vld [vmem:[#allocation2 + $0xc] sm:$0xff]
        %v360 = vld [vmem:[#allocation2 + $0x14] sm:$0xf]
        %v361 = vld [vmem:[#allocation2 + $0x18] sm:$0xff]
        %v362 = vld [vmem:[#allocation2 + $0x20] sm:$0xf]
        %v363 = vld [vmem:[#allocation2 + $0x24] sm:$0xff]
        %v364 = vld [vmem:[#allocation2 + $0x2c] sm:$0xf]
        %v365 = vld [vmem:[#allocation2 + $0x30] sm:$0x33]
        %v366 = vld [vmem:[#allocation2 + $0x38] sm:$0x3]
        %v377 = vunpack.c.l.b16 %v357
        %v378 = vunpack.c.h.b16 %v357
        %v379 = vunpack.c.l.b16 %v358
        %v380 = vunpack.c.l.b16 %v359
        %v381 = vunpack.c.h.b16 %v359
        %v382 = vunpack.c.l.b16 %v360
        %v383 = vunpack.c.l.b16 %v361
        %v384 = vunpack.c.h.b16 %v361
        %v385 = vunpack.c.l.b16 %v362
        %v386 = vunpack.c.l.b16 %v363
        %v387 = vunpack.c.h.b16 %v363
        %v388 = vunpack.c.l.b16 %v364
        %v389 = vunpack.c.l.b16 %v365
        %v390 = vunpack.c.h.b16 %v365
        %v391 = vunpack.c.l.b16 %v366
        %v392 = vpack.c.b16 %v380, %v377
        %v393 = vpack.c.b16 %v381, %v378
        %v394 = vpack.c.b16 %v382, %v379
        %v395 = vpack.c.b16 %v386, %v383
        %v396 = vpack.c.b16 %v387, %v384
        %v397 = vpack.c.b16 %v388, %v385
        %v398 = vpack.c.b16 %v389, %v389
        %v399 = vpack.c.b16 %v390, %v390
        %v400 = vpack.c.b16 %v391, %v391
        %vm407 = vcmask 293888
        %v409 = vsel %vm407, %v356, 0
        %vm411 = vcmask 1041408
        %v413 = vsel %vm411, %v398, 0
        %v416 = vsel %vm411, %v399, 0
        %v419 = vsel %vm411, %v400, 0
        %421 = vmatpush.bf16.msra.mxu0 0
        %422 = vmatpush.bf16.msra.mxu0 0
        %423 = vmatpush.bf16.msra.mxu0 0
        %424 = vmatpush.bf16.msra.mxu0 0
        %425 = vmatpush.bf16.msra.mxu0 0
        %426 = vmatpush.bf16.msra.mxu0 %v413
        %427 = vmatpush.bf16.msra.mxu0 %v395
        %428 = vmatpush.bf16.msra.mxu0 %v392
        %429 = vmatmul.bf16.gmra.mxu0 %v409
        %v430 = vpop.f32.mrf.mxu0
        %v431 = vadd.f32 0.0, %v430
        %v432 = vpop.f32.mrf.mxu0
        %433 = vdwg.mxu0
        %434 = vmatpush.bf16.msra.mxu0 0
        %435 = vmatpush.bf16.msra.mxu0 0
        %436 = vmatpush.bf16.msra.mxu0 0
        %437 = vmatpush.bf16.msra.mxu0 0
        %438 = vmatpush.bf16.msra.mxu0 0
        %439 = vmatpush.bf16.msra.mxu0 %v416
        %440 = vmatpush.bf16.msra.mxu0 %v396
        %441 = vmatpush.bf16.msra.mxu0 %v393
        %442 = vmatmul.bf16.gmra.mxu0 %v409
        %v443 = vpop.f32.mrf.mxu0
        %v444 = vadd.f32 0.0, %v443
        %v445 = vpop.f32.mrf.mxu0
        %446 = vdwg.mxu0
        %447 = vmatpush.bf16.msra.mxu0 0
        %448 = vmatpush.bf16.msra.mxu0 0
        %449 = vmatpush.bf16.msra.mxu0 0
        %450 = vmatpush.bf16.msra.mxu0 0
        %451 = vmatpush.bf16.msra.mxu0 0
        %452 = vmatpush.bf16.msra.mxu0 %v419
        %453 = vmatpush.bf16.msra.mxu0 %v397
        %454 = vmatpush.bf16.msra.mxu0 %v394
        %455 = vmatmul.bf16.gmra.mxu0 %v409
        %v456 = vpop.f32.mrf.mxu0
        %v457 = vadd.f32 0.0, %v456
        %v458 = vpop.f32.mrf.mxu0
        %459 = vdwg.mxu0
        %v460 = vlaneseq
        %v461 = vand.u32 %v460, 127
        %v462 = vadd.s32 %v461, 128
        %v463 = vadd.s32 %v461, 256
        %v464 = vcvt.s32.f32 %v461
        %v465 = vcvt.s32.f32 %v462
        %v466 = vcvt.s32.f32 %v463
        %v467 = vrcp.pop 18.0
        %v468 = vmul.f32 18.0, %v467
        %v469 = vsub.f32 1.0, %v468
        %v470 = vmul.f32 %v467, %v469
        %v471 = vadd.f32 %v467, %v470
        %vm472 = vweird.f32 %v467
        %v473 = vsel %vm472, %v467, %v471
        %v474 = vmul.f32 %v464, %v473
        %v475 = vmul.f32 %v465, %v473
        %v476 = vmul.f32 %v466, %v473
        %v477 = vfloor.f32 %v474
        %v478 = vfloor.f32 %v475
        %v479 = vfloor.f32 %v476
        %v480 = vmul.f32 %v477, 18.0
        %v481 = vmul.f32 %v478, 18.0
        %v482 = vmul.f32 %v479, 18.0
        %v483 = vsub.f32 %v464, %v480
        %v484 = vsub.f32 %v465, %v481
        %v485 = vsub.f32 %v466, %v482
        %vm486 = vcmp.lt.f32.partialorder %v464, 324.0
        %vm487 = vcmp.lt.f32.partialorder %v465, 324.0
        %vm488 = vcmp.lt.f32.partialorder %v466, 324.0
        %vm489 = vcmp.le.f32.partialorder %v477, 15.0
        %vm490 = vcmp.le.f32.partialorder %v478, 15.0
        %vm491 = vcmp.le.f32.partialorder %v479, 15.0
        %vm492 = vmand %vm486, %vm489
        %vm493 = vmand %vm487, %vm490
        %vm494 = vmand %vm488, %vm491
        %vm495 = vcmp.le.f32.partialorder %v483, 15.0
        %vm496 = vcmp.le.f32.partialorder %v484, 15.0
        %vm497 = vcmp.le.f32.partialorder %v485, 15.0
        %vm498 = vmand %vm492, %vm495
        %vm499 = vmand %vm493, %vm496
        %vm500 = vmand %vm494, %vm497
        %v501 = vsel %vm498, 1, 0
        %v502 = vsel %vm499, 1, 0
        %v503 = vsel %vm500, 1, 0
        %v504 = vcvt.s32.f32 %v501
        %v505 = vcvt.s32.f32 %v502
        %v506 = vcvt.s32.f32 %v503
        %v507 = vmul.f32 %v431, %v504
        %v508 = vmul.f32 %v444, %v505
        %v509 = vmul.f32 %v457, %v506
        %v510 = vadd.f32 %v507, %v508
        %v511 = vadd.f32 %v510, %v509
        %512 = vadd.xlane.f32.xlu0 %v511
        %v513 = vpop.xlane.xlu0 %512
        %v514 = vmul.f32 %v507, %v431
        %v515 = vmul.f32 %v508, %v444
        %v516 = vmul.f32 %v509, %v457
        %v517 = vadd.f32 %v514, %v515
        %v518 = vadd.f32 %v517, %v516
        %519 = vadd.xlane.f32.xlu0 %v518
        %v520 = vpop.xlane.xlu0 %519
        %v521 = vmul.f32 %v513, 0.00390625
        %v522 = vmul.f32 %v520, 0.00390625
        %v523 = vmul.f32 %v521, %v521
        %v524 = vsub.f32 %v522, %v523
        %v525 = vmax.f32 %v524, 0.0
        %v526 = vld [vmem:[%s2] sm:$0xff]
        %v527 = vadd.f32 %v525, 1e-05
        %v528 = vrsqrt.pop %v527
        %v529 = vmul.f32 %v528, %v527
        %v530 = vmul.f32 %v529, %v528
        %v531 = vmul.f32 0.5, %v530
        %v532 = vsub.f32 1.5, %v531
        %v533 = vmul.f32 %v528, %v532
        %vm534 = vweird.f32 %v527
        %vm535 = vweird.f32 %v528
        %vm536 = vmor %vm534, %vm535
        %v537 = vsel %vm536, %v528, %v533
        %v538 = vmul.f32 %v526, %v537
        %v539 = vmul.f32 %v521, %v538
        %541 = vrot.lane.b32.xlu0 %v539, 1
        %v542 = vpop.permute.xlu0 %541
        %v544 = vsub.f32 %v526, %v542
        %546 = vset.pattern.permute.xlu0 0
        %547 = vperm.xlu0 %546, %v538
        %v548 = vpop.permute.xlu0 %547
        %v550 = vmul.f32 %v431, %v548
        %v551 = vmul.f32 %v444, %v548
        %v552 = vmul.f32 %v457, %v548
        %554 = vset.pattern.permute.xlu0 1
        %555 = vperm.xlu0 %554, %v544
        %v556 = vpop.permute.xlu0 %555
        %v558 = vadd.f32 %v550, %v556
        %v559 = vadd.f32 %v551, %v556
        %v560 = vadd.f32 %v552, %v556
        %561 = vst [vmem:[%s188] sm:$0xff] %v558
        %562 = vst [vmem:[%s188 + $0x8] sm:$0xff] %v559
        %563 = vst [vmem:[%s188 + $0x10] sm:$0xff] %v560
        %s564 = sand.u32 %s96, 1
        %s565 = scalar_lea.sflag [#allocation5], %s564
        %s566 = sand.u32 %s96, 1
        %s567 = smul.addr %s566, 24
        %s568 = scalar_lea.vmem [#allocation6], %s567
        // Predicated region
        $region37: #{tpu_custom_call.1} parent=31 // pred_check
          %p569 = pneg %p106
        $region38: #{tpu_custom_call.1} parent=31 // pred_check_branch
          %571 = sbr.rel (%p569) target = $region40
        $region39: #{tpu_custom_call.1} parent=31 // pred_region
          %573 = vsyncadd %s565, 0
          %s574 = smul.addr %s20, 3
          %s575 = smul.addr %s574, 8
          %s576 = scalar_lea.hbm %s3, %s575
          %s578 = sshll.u32 %s568, 4
          %s579 = int_to_ptr.vmem [resolvable:$true] %s578
          %s580 = sshll.u32 %s576, 4
          %s581 = int_to_ptr.hbm [resolvable:$true] %s580
          %583 = dma.vmem_to_hbm [thread:$0]  %s579, 384, %s581, %s565
        $region40: #{tpu_custom_call.1} parent=31 // pred_fallthru
          _
      $region32: #{tpu_custom_call.1} parent=5 // pred_fallthru
        _
      %p584 = scmp.le.s32.totalorder 2, %s15
      // Predicated region
      $region41: #{tpu_custom_call.1} parent=5 // pred_check
        %p585 = pneg %p584
      $region42: #{tpu_custom_call.1} parent=5 // pred_check_branch
        %587 = sbr.rel (%p585) target = $region44
      $region43: #{tpu_custom_call.1} parent=5 // pred_region
        %s588 = ssub.s32 %s15, 2
        // Predicated region
        $region45: #{tpu_custom_call.1} parent=43 // pred_check
          %p589 = pneg %p112
        $region46: #{tpu_custom_call.1} parent=43 // pred_check_branch
          %591 = sbr.rel (%p589) target = $region48
        $region47: #{tpu_custom_call.1} parent=43 // pred_region
          %s592 = sand.u32 %s97, 1
          %s593 = scalar_lea.sflag [#allocation5], %s592
          %s594 = sand.u32 %s97, 1
          %s595 = smul.addr %s594, 24
          %s596 = scalar_lea.vmem [#allocation6], %s595
          %598 = dma.done %s593, 384
        $region48: #{tpu_custom_call.1} parent=43 // pred_fallthru
          _
      $region44: #{tpu_custom_call.1} parent=5 // pred_fallthru
        _
    $region6: #{tpu_custom_call.1} parent=1 // loop_footer
      %s19 = sadd.s32 1, %s15
    $region7: #{tpu_custom_call.1} parent=1 // loop_footer_branch
      %14 = sbr.rel target = $region3
    $region8: #{tpu_custom_call.1} parent=1 // loop_exit
      _
    %599 = vsyncpa [#allocation4], 1
    %s600 = scalar_lea.sflag [#allocation4], 1
    %601 = vsyncpa %s600, 1
    %602 = vsyncpa [#allocation5], 1
    %s603 = scalar_lea.sflag [#allocation5], 1
    %604 = vsyncpa %s603, 1

// kernel: tpu_custom_call.1
$region0: #{tpu_custom_call.1}
  #allocation0 [shape = 'u32[]', space=smem, size = 0x4, offset = 0x4, fixed_abs, tag = 'smem constant byte address 0x4 - core index']
  #allocation1 [shape = 'u32[72,128]{1,0:T(1,128)}', space=vmem, size = 0x9000, scoped, tag = 'internal scratch']
  #allocation2 [shape = 'bf16[36,384]{1,0:T(8,128)(2,1)}', space=vmem, size = 0x7800, scoped, tag = 'scratch operand']
  %s0 = inlined_call_operand.hbm [shape: bf16[2,4,512], index: 0, kind: input, shape index: {}]
  %s1 = inlined_call_operand.vmem [shape: bf16[8,36], index: 1, kind: input, shape index: {}]
  %s2 = inlined_call_operand.vmem [shape: f32[8,2], index: 2, kind: input, shape index: {}]
  %s3 = inlined_call_operand.hbm [shape: f32[2,8,384], index: 3, kind: output, shape index: {}]
  %s4 = sld [smem:[#allocation0]]
  $region49: #{tpu_custom_call.1} parent=0
    _
  %s6 = ssub.s32 1, %s4
  %s7 = scalar_select 0, %s6, %s4
  $region1: #{tpu_custom_call.1} parent=0
    #allocation3 [shape = 'u8[8192]{0}', space=vmem, size = 0x2000, scoped, tag = 'input window, operand 0']
    #allocation4 [shape = 's32[2]{0}', space=sflag, size = 0x8, scoped, tag = 'scoped memory for tpu_custom_call.1']
    #allocation5 [shape = 's32[2]{0}', space=sflag, size = 0x8, scoped, tag = 'scoped memory for tpu_custom_call.1']
    #allocation6 [shape = 'u8[24576]{0}', space=vmem, size = 0x6000, scoped, tag = 'output window, operand 0']
    %8 = vsyncpa [#allocation4], 0
    %s9 = scalar_lea.sflag [#allocation4], 1
    %10 = vsyncpa %s9, 0
    %11 = vsyncpa [#allocation5], 0
    %s12 = scalar_lea.sflag [#allocation5], 1
    %13 = vsyncpa %s12, 0
    loop: start=0, step=1, limit=4
    $region2: #{tpu_custom_call.1} parent=1 // loop_pre_header
      _
    $region3: #{tpu_custom_call.1} parent=1 // loop_header
      %s15 = sphi 0, %s19
      %p16 = scmp.ge.s32.totalorder %s15, 4
      %s25 = sphi 0, %s27
      %s28 = sphi 0, %s25
      %s29 = sphi 0, %s28
      %s45 = sphi 0, %s29
      %s49 = sphi 0, %s49
      %s51 = sphi 0, %s49
      %s52 = sphi 0, %s51
      %s66 = sphi 0, %s52
      %s70 = sphi 0, %s70
      %s72 = sphi 0, %s70
      %s73 = sphi 0, %s72
      %s87 = sphi 0, %s73
      %s93 = sphi 0, %s95
      %s96 = sphi 0, %s93
      %s97 = sphi 0, %s96
      %s113 = sphi 0, %s97
    $region4: #{tpu_custom_call.1} parent=1 // loop_header_branch
      %18 = sbr.rel (%p16) target = $region8
    $region5: #{tpu_custom_call.1} parent=1 // loop_body
      %s20 = ssub.s32 %s15, 1
      %s21 = ssub.s32 %s15, 2
      %s22 = sadd.s32 %s15, 1
      %s23 = ssub.s32 %s15, %s22
      %p24 = scmp.eq.s32.totalorder %s23, 0
      %s26 = sadd.s32 %s25, 1
      %s27 = scalar_select %p24, %s25, %s26
      %p30 = pneg %p24
      %p31 = scmp.eq.s32.totalorder %s15, 1
      %p32 = por %p30, %p31
      %p33 = scmp.ne.s32.totalorder %s25, %s28
      %p34 = scmp.eq.s32.totalorder %s15, 0
      %p35 = por %p33, %p34
      %p36 = scmp.ne.s32.totalorder %s25, %s28
      %p37 = scmp.eq.s32.totalorder %s20, 1
      %p38 = por %p36, %p37
      %p39 = scmp.ne.s32.totalorder %s28, %s29
      %p40 = scmp.eq.s32.totalorder %s20, 0
      %p41 = por %p39, %p40
      %p42 = scmp.ne.s32.totalorder %s28, %s29
      %p43 = scmp.eq.s32.totalorder %s21, 1
      %p44 = por %p42, %p43
      %p46 = scmp.ne.s32.totalorder %s29, %s45
      %p47 = scmp.eq.s32.totalorder %s21, 0
      %p48 = por %p46, %p47
      %s50 = sadd.s32 %s49, 1
      %p53 = scmp.eq.s32.totalorder %s15, 1
      %p54 = scmp.ne.s32.totalorder %s49, %s51
      %p55 = scmp.eq.s32.totalorder %s15, 0
      %p56 = por %p54, %p55
      %p57 = scmp.ne.s32.totalorder %s49, %s51
      %p58 = scmp.eq.s32.totalorder %s20, 1
      %p59 = por %p57, %p58
      %p60 = scmp.ne.s32.totalorder %s51, %s52
      %p61 = scmp.eq.s32.totalorder %s20, 0
      %p62 = por %p60, %p61
      %p63 = scmp.ne.s32.totalorder %s51, %s52
      %p64 = scmp.eq.s32.totalorder %s21, 1
      %p65 = por %p63, %p64
      %p67 = scmp.ne.s32.totalorder %s52, %s66
      %p68 = scmp.eq.s32.totalorder %s21, 0
      %p69 = por %p67, %p68
      %s71 = sadd.s32 %s70, 1
      %p74 = scmp.eq.s32.totalorder %s15, 1
      %p75 = scmp.ne.s32.totalorder %s70, %s72
      %p76 = scmp.eq.s32.totalorder %s15, 0
      %p77 = por %p75, %p76
      %p78 = scmp.ne.s32.totalorder %s70, %s72
      %p79 = scmp.eq.s32.totalorder %s20, 1
      %p80 = por %p78, %p79
      %p81 = scmp.ne.s32.totalorder %s72, %s73
      %p82 = scmp.eq.s32.totalorder %s20, 0
      %p83 = por %p81, %p82
      %p84 = scmp.ne.s32.totalorder %s72, %s73
      %p85 = scmp.eq.s32.totalorder %s21, 1
      %p86 = por %p84, %p85
      %p88 = scmp.ne.s32.totalorder %s73, %s87
      %p89 = scmp.eq.s32.totalorder %s21, 0
      %p90 = por %p88, %p89
      %s91 = ssub.s32 %s15, %s22
      %p92 = scmp.eq.s32.totalorder %s91, 0
      %s94 = sadd.s32 %s93, 1
      %s95 = scalar_select %p92, %s93, %s94
      %p98 = pneg %p92
      %p99 = scmp.eq.s32.totalorder %s15, 1
      %p100 = por %p98, %p99
      %p101 = scmp.ne.s32.totalorder %s93, %s96
      %p102 = scmp.eq.s32.totalorder %s15, 0
      %p103 = por %p101, %p102
      %p104 = scmp.ne.s32.totalorder %s93, %s96
      %p105 = scmp.eq.s32.totalorder %s20, 1
      %p106 = por %p104, %p105
      %p107 = scmp.ne.s32.totalorder %s96, %s97
      %p108 = scmp.eq.s32.totalorder %s20, 0
      %p109 = por %p107, %p108
      %p110 = scmp.ne.s32.totalorder %s96, %s97
      %p111 = scmp.eq.s32.totalorder %s21, 1
      %p112 = por %p110, %p111
      %p114 = scmp.ne.s32.totalorder %s97, %s113
      %p115 = scmp.eq.s32.totalorder %s21, 0
      %p116 = por %p114, %p115
      %p117 = scmp.le.s32.totalorder 1, %s15
      %p118 = scmp.lt.s32.totalorder %s15, 3
      %p119 = pnand %p117, %p118
      %p120 = pneg %p119
      // Predicated region
      $region9: #{tpu_custom_call.1} parent=5 // pred_check
        _
      $region10: #{tpu_custom_call.1} parent=5 // pred_check_branch
        %122 = sbr.rel (%p119) target = $region12
      $region11: #{tpu_custom_call.1} parent=5 // pred_region
        %s123 = ssub.s32 %s15, 1
        // Predicated region
        $region13: #{tpu_custom_call.1} parent=11 // pred_check
          %p124 = pneg %p62
        $region14: #{tpu_custom_call.1} parent=11 // pred_check_branch
          %126 = sbr.rel (%p124) target = $region16
        $region15: #{tpu_custom_call.1} parent=11 // pred_region
          _
        $region16: #{tpu_custom_call.1} parent=11 // pred_fallthru
          _
        // Predicated region
        $region17: #{tpu_custom_call.1} parent=11 // pred_check
          %p127 = pneg %p83
        $region18: #{tpu_custom_call.1} parent=11 // pred_check_branch
          %129 = sbr.rel (%p127) target = $region20
        $region19: #{tpu_custom_call.1} parent=11 // pred_region
          _
        $region20: #{tpu_custom_call.1} parent=11 // pred_fallthru
          _
      $region12: #{tpu_custom_call.1} parent=5 // pred_fallthru
        _
      %p130 = scmp.lt.s32.totalorder %s15, 2
      // Predicated region
      $region21: #{tpu_custom_call.1} parent=5 // pred_check
        %p131 = pneg %p130
      $region22: #{tpu_custom_call.1} parent=5 // pred_check_branch
        %133 = sbr.rel (%p131) target = $region24
      $region23: #{tpu_custom_call.1} parent=5 // pred_region
        // Predicated region
        $region25: #{tpu_custom_call.1} parent=23 // pred_check
          %p134 = pneg %p35
        $region26: #{tpu_custom_call.1} parent=23 // pred_check_branch
          %136 = sbr.rel (%p134) target = $region28
        $region27: #{tpu_custom_call.1} parent=23 // pred_region
          %s137 = sand.u32 %s25, 1
          %s138 = scalar_lea.sflag [#allocation4], %s137
          %s139 = sand.u32 %s25, 1
          %s140 = smul.addr %s139, 8
          %s141 = scalar_lea.vmem [#allocation3], %s140
          %143 = vsyncadd %s138, 0
          %s144 = smul.addr %s15, 4
          %s145 = smul.addr %s144, 2
          %s146 = scalar_lea.hbm %s0, %s145
          %s148 = sshll.u32 %s146, 4
          %s149 = int_to_ptr.hbm [resolvable:$true] %s148
          %s150 = sshll.u32 %s141, 4
          %s151 = int_to_ptr.vmem [resolvable:$true] %s150
          %153 = dma.hbm_to_vmem [thread:$0]  %s149, 128, %s151, %s138
        $region28: #{tpu_custom_call.1} parent=23 // pred_fallthru
          _
      $region24: #{tpu_custom_call.1} parent=5 // pred_fallthru
        _
      %p154 = scmp.le.s32.totalorder 1, %s15
      %p155 = scmp.lt.s32.totalorder %s15, 3
      %p156 = pnand %p154, %p155
      %p157 = pneg %p156
      // Predicated region
      $region29: #{tpu_custom_call.1} parent=5 // pred_check
        _
      $region30: #{tpu_custom_call.1} parent=5 // pred_check_branch
        %159 = sbr.rel (%p156) target = $region32
      $region31: #{tpu_custom_call.1} parent=5 // pred_region
        %s160 = ssub.s32 %s15, 1
        %s161 = sand.u32 %s28, 1
        %s162 = scalar_lea.sflag [#allocation4], %s161
        %s163 = sand.u32 %s28, 1
        %s164 = smul.addr %s163, 8
        %s165 = scalar_lea.vmem [#allocation3], %s164
        // Predicated region
        $region33: #{tpu_custom_call.1} parent=31 // pred_check
          %p166 = pneg %p41
        $region34: #{tpu_custom_call.1} parent=31 // pred_check_branch
          %168 = sbr.rel (%p166) target = $region36
        $region35: #{tpu_custom_call.1} parent=31 // pred_region
          %170 = dma.done %s162, 128
        $region36: #{tpu_custom_call.1} parent=31 // pred_fallthru
          _
        %s171 = sand.u32 %s28, 1
        %s172 = scalar_lea.sflag [#allocation4], %s171
        %s173 = sand.u32 %s28, 1
        %s174 = smul.addr %s173, 8
        %s175 = scalar_lea.vmem [#allocation3], %s174
        %p176 = pneg %p41
        %p177 = pneg %p38
        %p178 = pneg %p62
        %p179 = pneg %p59
        %p180 = pneg %p83
        %p181 = pneg %p80
        %p182 = pneg %p109
        %p183 = pneg %p106
        %s184 = sand.u32 %s96, 1
        %s185 = scalar_lea.sflag [#allocation5], %s184
        %s186 = sand.u32 %s96, 1
        %s187 = smul.addr %s186, 24
        %s188 = scalar_lea.vmem [#allocation6], %s187
        %v190 = vld [vmem:[%s165] sm:$0xff]
        %192 = vst [vmem:[#allocation1] ss:$2 sm:$0xff] %v190
        %v193 = vld.sshfl [vmem:[#allocation1] sm:$0xff pattern:$0x75643120]
        %v194 = vld.sshfl [vmem:[#allocation1 + $0x8] sm:$0xff pattern:$0x75643120]
        %197 = vst [vmem:[#allocation2] sm:$0x33] %v193
        %198 = vst [vmem:[#allocation2 + $0x8] sm:$0x3] %v194
        %s199 = scalar_lea.vmem [#allocation1], 1
        %200 = vst [vmem:[%s199] ss:$2 sm:$0xff] %v190
        %v201 = vld.sshfl [vmem:[#allocation1] sm:$0xff pattern:$0x75643120]
        %v203 = vld.sshfl [vmem:[#allocation1 + $0x8] sm:$0xff pattern:$0x75643120]
        %205 = vrot.lane.b32.xlu0 %v201, 127
        %v206 = vpop.permute.xlu0 %205
        %207 = vrot.lane.b32.xlu0 %v203, 127
        %v208 = vpop.permute.xlu0 %207
        %v209 = vrot.slane %v206, 4
        %v210 = vrot.slane %v208, 4
        %vm211 = vcmask 1043456
        %v212 = vsel %vm211, %v209, %v210
        %vm213 = vcmask 1039360
        %v214 = vsel %vm213, %v206, %v212
        %v215 = vsel %vm213, %v208, %v210
        %218 = vst [vmem:[#allocation2] sm:$0xcc] %v214
        %219 = vst [vmem:[#allocation2 + $0x8] sm:$0xc] %v215
        %220 = vst [vmem:[#allocation1] ss:$2 sm:$0xff] %v190
        %v221 = vld.sshfl [vmem:[#allocation1] sm:$0xff pattern:$0x75643120]
        %v223 = vld.sshfl [vmem:[#allocation1 + $0x8] sm:$0xff pattern:$0x75643120]
        %225 = vrot.lane.b32.xlu0 %v221, 126
        %v226 = vpop.permute.xlu0 %225
        %227 = vrot.lane.b32.xlu0 %v223, 126
        %v228 = vpop.permute.xlu0 %227
        %v229 = vrot.slane %v226, 4
        %v230 = vrot.slane %v228, 4
        %v231 = vsel %vm211, %v229, %v230
        %vm232 = vcmask 1031168
        %v233 = vsel %vm232, %v226, %v231
        %v234 = vsel %vm232, %v228, %v230
        %237 = vst [vmem:[#allocation2 + $0xc] sm:$0x33] %v233
        %238 = vst [vmem:[#allocation2 + $0x14] sm:$0x3] %v234
        %s239 = scalar_lea.vmem [#allocation1], 1
        %240 = vst [vmem:[%s239] ss:$2 sm:$0xff] %v190
        %v241 = vld.sshfl [vmem:[#allocation1] sm:$0xff pattern:$0x75643120]
        %v243 = vld.sshfl [vmem:[#allocation1 + $0x8] sm:$0xff pattern:$0x75643120]
        %245 = vrot.lane.b32.xlu0 %v241, 110
        %v246 = vpop.permute.xlu0 %245
        %247 = vrot.lane.b32.xlu0 %v243, 110
        %v248 = vpop.permute.xlu0 %247
        %v249 = vrot.slane %v246, 4
        %v250 = vrot.slane %v248, 4
        %v251 = vsel %vm211, %v249, %v250
        %vm252 = vcmask 900096
        %v253 = vsel %vm252, %v246, %v251
        %v254 = vsel %vm252, %v248, %v250
        %257 = vst [vmem:[#allocation2 + $0xc] sm:$0xcc] %v253
        %258 = vst [vmem:[#allocation2 + $0x14] sm:$0xc] %v254
        %259 = vst [vmem:[#allocation1] ss:$2 sm:$0xff] %v190
        %v260 = vld.sshfl [vmem:[#allocation1] sm:$0xff pattern:$0x75643120]
        %v262 = vld.sshfl [vmem:[#allocation1 + $0x8] sm:$0xff pattern:$0x75643120]
        %264 = vrot.lane.b32.xlu0 %v260, 109
        %v265 = vpop.permute.xlu0 %264
        %266 = vrot.lane.b32.xlu0 %v262, 109
        %v267 = vpop.permute.xlu0 %266
        %v268 = vrot.slane %v265, 4
        %v269 = vrot.slane %v267, 4
        %v270 = vsel %vm211, %v268, %v269
        %vm271 = vcmask 891904
        %v272 = vsel %vm271, %v265, %v270
        %v273 = vsel %vm271, %v267, %v269
        %276 = vst [vmem:[#allocation2 + $0x18] sm:$0x33] %v272
        %277 = vst [vmem:[#allocation2 + $0x20] sm:$0x3] %v273
        %s278 = scalar_lea.vmem [#allocation1], 1
        %279 = vst [vmem:[%s278] ss:$2 sm:$0xff] %v190
        %v280 = vld.sshfl [vmem:[#allocation1] sm:$0xff pattern:$0x75643120]
        %v282 = vld.sshfl [vmem:[#allocation1 + $0x8] sm:$0xff pattern:$0x75643120]
        %284 = vrot.lane.b32.xlu0 %v280, 108
        %v285 = vpop.permute.xlu0 %284
        %286 = vrot.lane.b32.xlu0 %v282, 108
        %v287 = vpop.permute.xlu0 %286
        %v288 = vrot.slane %v285, 4
        %v289 = vrot.slane %v287, 4
        %v290 = vsel %vm211, %v288, %v289
        %vm291 = vcmask 883712
        %v292 = vsel %vm291, %v285, %v290
        %v293 = vsel %vm291, %v287, %v289
        %296 = vst [vmem:[#allocation2 + $0x18] sm:$0xcc] %v292
        %297 = vst [vmem:[#allocation2 + $0x20] sm:$0xc] %v293
        %298 = vst [vmem:[#allocation1] ss:$2 sm:$0xff] %v190
        %v299 = vld.sshfl [vmem:[#allocation1] sm:$0xff pattern:$0x75643120]
        %v301 = vld.sshfl [vmem:[#allocation1 + $0x8] sm:$0xff pattern:$0x75643120]
        %303 = vrot.lane.b32.xlu0 %v299, 92
        %v304 = vpop.permute.xlu0 %303
        %305 = vrot.lane.b32.xlu0 %v301, 92
        %v306 = vpop.permute.xlu0 %305
        %v307 = vrot.slane %v304, 4
        %v308 = vrot.slane %v306, 4
        %v309 = vsel %vm211, %v307, %v308
        %vm310 = vcmask 752640
        %v311 = vsel %vm310, %v304, %v309
        %v312 = vsel %vm310, %v306, %v308
        %315 = vst [vmem:[#allocation2 + $0x24] sm:$0x33] %v311
        %316 = vst [vmem:[#allocation2 + $0x2c] sm:$0x3] %v312
        %s317 = scalar_lea.vmem [#allocation1], 1
        %318 = vst [vmem:[%s317] ss:$2 sm:$0xff] %v190
        %v319 = vld.sshfl [vmem:[#allocation1] sm:$0xff pattern:$0x75643120]
        %v321 = vld.sshfl [vmem:[#allocation1 + $0x8] sm:$0xff pattern:$0x75643120]
        %323 = vrot.lane.b32.xlu0 %v319, 91
        %v324 = vpop.permute.xlu0 %323
        %325 = vrot.lane.b32.xlu0 %v321, 91
        %v326 = vpop.permute.xlu0 %325
        %v327 = vrot.slane %v324, 4
        %v328 = vrot.slane %v326, 4
        %v329 = vsel %vm211, %v327, %v328
        %vm330 = vcmask 744448
        %v331 = vsel %vm330, %v324, %v329
        %v332 = vsel %vm330, %v326, %v328
        %335 = vst [vmem:[#allocation2 + $0x24] sm:$0xcc] %v331
        %336 = vst [vmem:[#allocation2 + $0x2c] sm:$0xc] %v332
        %337 = vst [vmem:[#allocation1] ss:$2 sm:$0xff] %v190
        %v338 = vld.sshfl [vmem:[#allocation1] sm:$0xff pattern:$0x75643120]
        %v340 = vld.sshfl [vmem:[#allocation1 + $0x8] sm:$0xff pattern:$0x75643120]
        %342 = vrot.lane.b32.xlu0 %v338, 90
        %v343 = vpop.permute.xlu0 %342
        %344 = vrot.lane.b32.xlu0 %v340, 90
        %v345 = vpop.permute.xlu0 %344
        %v346 = vrot.slane %v343, 4
        %v347 = vrot.slane %v345, 4
        %v348 = vsel %vm211, %v346, %v347
        %vm349 = vcmask 736256
        %v350 = vsel %vm349, %v343, %v348
        %v351 = vsel %vm349, %v345, %v347
        %354 = vst [vmem:[#allocation2 + $0x30] sm:$0x33] %v350
        %355 = vst [vmem:[#allocation2 + $0x38] sm:$0x3] %v351
        %v356 = vld [vmem:[%s1] sm:$0xf]
        %v357 = vld [vmem:[#allocation2] sm:$0xff]
        %v358 = vld [vmem:[#allocation2 + $0x8] sm:$0xf]
        %v359 = vld [vmem:[#allocation2 + $0xc] sm:$0xff]
        %v360 = vld [vmem:[#allocation2 + $0x14] sm:$0xf]
        %v361 = vld [vmem:[#allocation2 + $0x18] sm:$0xff]
        %v362 = vld [vmem:[#allocation2 + $0x20] sm:$0xf]
        %v363 = vld [vmem:[#allocation2 + $0x24] sm:$0xff]
        %v364 = vld [vmem:[#allocation2 + $0x2c] sm:$0xf]
        %v365 = vld [vmem:[#allocation2 + $0x30] sm:$0x33]
        %v366 = vld [vmem:[#allocation2 + $0x38] sm:$0x3]
        %v377 = vunpack.c.l.b16 %v357
        %v378 = vunpack.c.h.b16 %v357
        %v379 = vunpack.c.l.b16 %v358
        %v380 = vunpack.c.l.b16 %v359
        %v381 = vunpack.c.h.b16 %v359
        %v382 = vunpack.c.l.b16 %v360
        %v383 = vunpack.c.l.b16 %v361
        %v384 = vunpack.c.h.b16 %v361
        %v385 = vunpack.c.l.b16 %v362
        %v386 = vunpack.c.l.b16 %v363
        %v387 = vunpack.c.h.b16 %v363
        %v388 = vunpack.c.l.b16 %v364
        %v389 = vunpack.c.l.b16 %v365
        %v390 = vunpack.c.h.b16 %v365
        %v391 = vunpack.c.l.b16 %v366
        %v392 = vpack.c.b16 %v380, %v377
        %v393 = vpack.c.b16 %v381, %v378
        %v394 = vpack.c.b16 %v382, %v379
        %v395 = vpack.c.b16 %v386, %v383
        %v396 = vpack.c.b16 %v387, %v384
        %v397 = vpack.c.b16 %v388, %v385
        %v398 = vpack.c.b16 %v389, %v389
        %v399 = vpack.c.b16 %v390, %v390
        %v400 = vpack.c.b16 %v391, %v391
        %vm407 = vcmask 293888
        %v409 = vsel %vm407, %v356, 0
        %vm411 = vcmask 1041408
        %v413 = vsel %vm411, %v398, 0
        %v416 = vsel %vm411, %v399, 0
        %v419 = vsel %vm411, %v400, 0
        %421 = vmatpush.bf16.msra.mxu0 0
        %422 = vmatpush.bf16.msra.mxu0 0
        %423 = vmatpush.bf16.msra.mxu0 0
        %424 = vmatpush.bf16.msra.mxu0 0
        %425 = vmatpush.bf16.msra.mxu0 0
        %426 = vmatpush.bf16.msra.mxu0 %v413
        %427 = vmatpush.bf16.msra.mxu0 %v395
        %428 = vmatpush.bf16.msra.mxu0 %v392
        %429 = vmatmul.bf16.gmra.mxu0 %v409
        %v430 = vpop.f32.mrf.mxu0
        %v431 = vadd.f32 0.0, %v430
        %v432 = vpop.f32.mrf.mxu0
        %433 = vdwg.mxu0
        %434 = vmatpush.bf16.msra.mxu0 0
        %435 = vmatpush.bf16.msra.mxu0 0
        %436 = vmatpush.bf16.msra.mxu0 0
        %437 = vmatpush.bf16.msra.mxu0 0
        %438 = vmatpush.bf16.msra.mxu0 0
        %439 = vmatpush.bf16.msra.mxu0 %v416
        %440 = vmatpush.bf16.msra.mxu0 %v396
        %441 = vmatpush.bf16.msra.mxu0 %v393
        %442 = vmatmul.bf16.gmra.mxu0 %v409
        %v443 = vpop.f32.mrf.mxu0
        %v444 = vadd.f32 0.0, %v443
        %v445 = vpop.f32.mrf.mxu0
        %446 = vdwg.mxu0
        %447 = vmatpush.bf16.msra.mxu0 0
        %448 = vmatpush.bf16.msra.mxu0 0
        %449 = vmatpush.bf16.msra.mxu0 0
        %450 = vmatpush.bf16.msra.mxu0 0
        %451 = vmatpush.bf16.msra.mxu0 0
        %452 = vmatpush.bf16.msra.mxu0 %v419
        %453 = vmatpush.bf16.msra.mxu0 %v397
        %454 = vmatpush.bf16.msra.mxu0 %v394
        %455 = vmatmul.bf16.gmra.mxu0 %v409
        %v456 = vpop.f32.mrf.mxu0
        %v457 = vadd.f32 0.0, %v456
        %v458 = vpop.f32.mrf.mxu0
        %459 = vdwg.mxu0
        %v460 = vlaneseq
        %v461 = vand.u32 %v460, 127
        %v462 = vadd.s32 %v461, 128
        %v463 = vadd.s32 %v461, 256
        %v464 = vcvt.s32.f32 %v461
        %v465 = vcvt.s32.f32 %v462
        %v466 = vcvt.s32.f32 %v463
        %v467 = vrcp.pop 18.0
        %v468 = vmul.f32 18.0, %v467
        %v469 = vsub.f32 1.0, %v468
        %v470 = vmul.f32 %v467, %v469
        %v471 = vadd.f32 %v467, %v470
        %vm472 = vweird.f32 %v467
        %v473 = vsel %vm472, %v467, %v471
        %v474 = vmul.f32 %v464, %v473
        %v475 = vmul.f32 %v465, %v473
        %v476 = vmul.f32 %v466, %v473
        %v477 = vfloor.f32 %v474
        %v478 = vfloor.f32 %v475
        %v479 = vfloor.f32 %v476
        %v480 = vmul.f32 %v477, 18.0
        %v481 = vmul.f32 %v478, 18.0
        %v482 = vmul.f32 %v479, 18.0
        %v483 = vsub.f32 %v464, %v480
        %v484 = vsub.f32 %v465, %v481
        %v485 = vsub.f32 %v466, %v482
        %vm486 = vcmp.lt.f32.partialorder %v464, 324.0
        %vm487 = vcmp.lt.f32.partialorder %v465, 324.0
        %vm488 = vcmp.lt.f32.partialorder %v466, 324.0
        %vm489 = vcmp.le.f32.partialorder %v477, 15.0
        %vm490 = vcmp.le.f32.partialorder %v478, 15.0
        %vm491 = vcmp.le.f32.partialorder %v479, 15.0
        %vm492 = vmand %vm486, %vm489
        %vm493 = vmand %vm487, %vm490
        %vm494 = vmand %vm488, %vm491
        %vm495 = vcmp.le.f32.partialorder %v483, 15.0
        %vm496 = vcmp.le.f32.partialorder %v484, 15.0
        %vm497 = vcmp.le.f32.partialorder %v485, 15.0
        %vm498 = vmand %vm492, %vm495
        %vm499 = vmand %vm493, %vm496
        %vm500 = vmand %vm494, %vm497
        %v501 = vsel %vm498, 1, 0
        %v502 = vsel %vm499, 1, 0
        %v503 = vsel %vm500, 1, 0
        %v504 = vcvt.s32.f32 %v501
        %v505 = vcvt.s32.f32 %v502
        %v506 = vcvt.s32.f32 %v503
        %v507 = vmul.f32 %v431, %v504
        %v508 = vmul.f32 %v444, %v505
        %v509 = vmul.f32 %v457, %v506
        %v510 = vadd.f32 %v507, %v508
        %v511 = vadd.f32 %v510, %v509
        %512 = vadd.xlane.f32.xlu0 %v511
        %v513 = vpop.xlane.xlu0 %512
        %v514 = vmul.f32 %v507, %v431
        %v515 = vmul.f32 %v508, %v444
        %v516 = vmul.f32 %v509, %v457
        %v517 = vadd.f32 %v514, %v515
        %v518 = vadd.f32 %v517, %v516
        %519 = vadd.xlane.f32.xlu0 %v518
        %v520 = vpop.xlane.xlu0 %519
        %v521 = vmul.f32 %v513, 0.00390625
        %v522 = vmul.f32 %v520, 0.00390625
        %v523 = vmul.f32 %v521, %v521
        %v524 = vsub.f32 %v522, %v523
        %v525 = vmax.f32 %v524, 0.0
        %v526 = vld [vmem:[%s2] sm:$0xff]
        %v527 = vadd.f32 %v525, 1e-05
        %v528 = vrsqrt.pop %v527
        %v529 = vmul.f32 %v528, %v527
        %v530 = vmul.f32 %v529, %v528
        %v531 = vmul.f32 0.5, %v530
        %v532 = vsub.f32 1.5, %v531
        %v533 = vmul.f32 %v528, %v532
        %vm534 = vweird.f32 %v527
        %vm535 = vweird.f32 %v528
        %vm536 = vmor %vm534, %vm535
        %v537 = vsel %vm536, %v528, %v533
        %v538 = vmul.f32 %v526, %v537
        %v539 = vmul.f32 %v521, %v538
        %541 = vrot.lane.b32.xlu0 %v539, 1
        %v542 = vpop.permute.xlu0 %541
        %v544 = vsub.f32 %v526, %v542
        %546 = vset.pattern.permute.xlu0 0
        %547 = vperm.xlu0 %546, %v538
        %v548 = vpop.permute.xlu0 %547
        %v550 = vmul.f32 %v431, %v548
        %v551 = vmul.f32 %v444, %v548
        %v552 = vmul.f32 %v457, %v548
        %554 = vset.pattern.permute.xlu0 1
        %555 = vperm.xlu0 %554, %v544
        %v556 = vpop.permute.xlu0 %555
        %v558 = vadd.f32 %v550, %v556
        %v559 = vadd.f32 %v551, %v556
        %v560 = vadd.f32 %v552, %v556
        %561 = vst [vmem:[%s188] sm:$0xff] %v558
        %562 = vst [vmem:[%s188 + $0x8] sm:$0xff] %v559
        %563 = vst [vmem:[%s188 + $0x10] sm:$0xff] %v560
        %s564 = sand.u32 %s96, 1
        %s565 = scalar_lea.sflag [#allocation5], %s564
        %s566 = sand.u32 %s96, 1
        %s567 = smul.addr %s566, 24
        %s568 = scalar_lea.vmem [#allocation6], %s567
        // Predicated region
        $region37: #{tpu_custom_call.1} parent=31 // pred_check
          %p569 = pneg %p106
        $region38: #{tpu_custom_call.1} parent=31 // pred_check_branch
          %571 = sbr.rel (%p569) target = $region40
        $region39: #{tpu_custom_call.1} parent=31 // pred_region
          %573 = vsyncadd %s565, 0
          %s574 = smul.addr %s20, 3
          %s575 = smul.addr %s574, 8
          %s576 = scalar_lea.hbm %s3, %s575
          %s578 = sshll.u32 %s568, 4
          %s579 = int_to_ptr.vmem [resolvable:$true] %s578
          %s580 = sshll.u32 %s576, 4
          %s581 = int_to_ptr.hbm [resolvable:$true] %s580
          %583 = dma.vmem_to_hbm [thread:$0]  %s579, 384, %s581, %s565
        $region40: #{tpu_custom_call.1} parent=31 // pred_fallthru
          _
      $region32: #{tpu_custom_call.1} parent=5 // pred_fallthru
        _
      %p584 = scmp.le.s32.totalorder 2, %s15
      // Predicated region
      $region41: #{tpu_custom_call.1} parent=5 // pred_check
        %p585 = pneg %p584
      $region42: #{tpu_custom_call.1} parent=5 // pred_check_branch
        %587 = sbr.rel (%p585) target = $region44
      $region43: #{tpu_custom_call.1} parent=5 // pred_region
        %s588 = ssub.s32 %s15, 2
        // Predicated region
        $region45: #{tpu_custom_call.1} parent=43 // pred_check
          %p589 = pneg %p112
        $region46: #{tpu_custom_call.1} parent=43 // pred_check_branch
          %591 = sbr.rel (%p589) target = $region48
        $region47: #{tpu_custom_call.1} parent=43 // pred_region
          %s592 = sand.u32 %s97, 1
          %s593 = scalar_lea.sflag [#allocation5], %s592
          %s594 = sand.u32 %s97, 1
          %s595 = smul.addr %s594, 24
          %s596 = scalar_lea.vmem [#allocation6], %s595
          %598 = dma.done %s593, 384
        $region48: #{tpu_custom_call.1} parent=43 // pred_fallthru
          _
      $region44: #{tpu_custom_call.1} parent=5 // pred_fallthru
        _
    $region6: #{tpu_custom_call.1} parent=1 // loop_footer
      %s19 = sadd.s32 1, %s15
    $region7: #{tpu_custom_call.1} parent=1 // loop_footer_branch
      %14 = sbr.rel target = $region3
    $region8: #{tpu_custom_call.1} parent=1 // loop_exit
      _
    %599 = vsyncpa [#allocation4], 1
    %s600 = scalar_lea.sflag [#allocation4], 1
    %601 = vsyncpa %s600, 1
    %602 = vsyncpa [#allocation5], 1
    %s603 = scalar_lea.sflag [#allocation5], 1
    %604 = vsyncpa %s603, 1

</llo_original>
